<compile_context>
chip_gen: v7x
topology: tpu7x:2x2x1
jax: 0.10.0
libtpu: 0.0.40
codegen_flags: <defaults>
</compile_context>

<pallas_src>
import functools
import math

import jax
import jax.numpy as jnp
import numpy as np
from jax import lax
from jax.experimental import pallas as pl
from jax.experimental.pallas import tpu as pltpu

# MXU operand dtype (bf16 MXU on v5e/v6e/v7x). Accumulation is f32 via
# preferred_element_type and every elementwise op stays f32.
MATMUL_DTYPE = jnp.bfloat16


# ------------------------------------------------------------------ helpers

def _layernorm(x, g, b, eps=1e-5):
    mu = jnp.mean(x, axis=-1, keepdims=True)
    var = jnp.mean(jnp.square(x - mu), axis=-1, keepdims=True)
    return (x - mu) * lax.rsqrt(var + eps) * g + b


def _gelu(x):
    # exact (erf) GELU, matching torch.nn.functional.gelu default
    return 0.5 * x * (1.0 + lax.erf(x * 0.7071067811865476))


def _full_spec(shape):
    zeros = (0,) * len(shape)
    return pl.BlockSpec(shape, lambda *_, _z=zeros: _z)


def _round_up(x, m):
    return ((x + m - 1) // m) * m


def _block_diag(w, n):
    # w: [L, a, b] -> [L, n*a, n*b]: n copies of each layer's w on the diagonal.
    L, a, b = w.shape
    eye = jnp.eye(n, dtype=w.dtype)
    return (eye[None, :, None, :, None] * w[:, None, :, None, :]).reshape(L, n * a, n * b)


def _pick_b_tile(B, P):
    # Fill the MXU M dim (bt*P up to 256 rows: one v6e/v7x pass, 2 v5e passes)
    # but keep >= 2 "parallel" grid steps when B allows, so the grid can shard
    # across v7x's two TensorCores.
    bt = max(8, min(_round_up(B, 8), max(8, (256 // max(P, 1)) // 8 * 8)))
    while bt > 8 and _round_up(B, bt) // bt < 2 <= _round_up(B, 8) // 8:
        bt -= 8
    return bt


# ------------------------------------------------------------------ kernels

def feat_encode_kernel(feats_ref, ts_ref, wt_ref, Wf_ref, Wt_ref, b_ref, out_ref):
    # TimeEncode: cos(t * w) ; FeatEncode: [feats | time_feats] @ Wenc + b,
    # computed in split-K form (== the single concatenated matmul).
    tfeat = jnp.cos(ts_ref[...] * wt_ref[...])                 # [Et,1]*[1,T] -> [Et,T]
    f = feats_ref[...].astype(MATMUL_DTYPE)
    t = tfeat.astype(MATMUL_DTYPE)
    out_ref[...] = (
        jnp.dot(f, Wf_ref[...], preferred_element_type=jnp.float32)
        + jnp.dot(t, Wt_ref[...], preferred_element_type=jnp.float32)
        + b_ref[...]
    )


def mixer_kernel(num_layers,
                 x_ref,
                 tln_g, tln_b, tW0bd, tb0bd, tW1bd, tb1bd,
                 cln_g, cln_b, cW0, cb0, cW1, cb1,
                 fln_g, fln_b, hW, hb,
                 out_ref):
    bt, P, C = x_ref.shape
    # Whole batch tile flattened to 2D [bt*P, C]; collapsing leading dims is
    # layout-preserving (P is a multiple of 8, row = b*P + p).
    x = x_ref[...].reshape(bt * P, C)                          # f32

    # Static unroll over layers (small L): static weight slices, no per-iter
    # scalar address math, cross-layer scheduling visibility.
    for l in range(num_layers):
        # ---- token mixing: token-major, transpose-free, one matmul pair ----
        # h = blockdiag(W0^T) @ LN(x) + b0 ; delta = blockdiag(W1^T) @ gelu(h) + b1
        y = _layernorm(x, tln_g[l], tln_b[l]).astype(MATMUL_DTYPE)     # [bt*P, C]
        h = jnp.dot(tW0bd[l], y, preferred_element_type=jnp.float32) + tb0bd[l]
        h = _gelu(h).astype(MATMUL_DTYPE)                               # [bt*tP, C]
        x = x + (jnp.dot(tW1bd[l], h, preferred_element_type=jnp.float32) + tb1bd[l])
        # ---- channel mixing: one big [bt*P, C] matmul pair ----
        y = _layernorm(x, cln_g[l], cln_b[l]).astype(MATMUL_DTYPE)
        h = jnp.dot(y, cW0[l], preferred_element_type=jnp.float32) + cb0[l]
        h = _gelu(h).astype(MATMUL_DTYPE)                               # [bt*P, cC]
        x = x + (jnp.dot(h, cW1[l], preferred_element_type=jnp.float32) + cb1[l])

    # final LayerNorm, mean over tokens, mlp_head (lane-dense padded output)
    x = _layernorm(x, fln_g[...], fln_b[...])                  # [bt*P, C]
    m = jnp.mean(x.reshape(bt, P, C), axis=1)                  # [bt, C]
    out_ref[...] = (jnp.dot(m.astype(MATMUL_DTYPE), hW[...],
                            preferred_element_type=jnp.float32) + hb[...])


# ------------------------------------------------------------------ wrappers

def run_feat_encode(edge_feats, edge_ts, params, e_tile_max=1024):
    E, F = edge_feats.shape
    H = params["Wf"].shape[1]
    # size the tile to the data: no padding of small E to a huge tile, and
    # 1024-row tiles for large E (per-grid-step overhead amortized).
    e_tile = min(e_tile_max, _round_up(max(E, 1), 8))
    E_pad = _round_up(max(E, 1), e_tile)
    feats = jnp.pad(edge_feats.astype(jnp.float32), ((0, E_pad - E), (0, 0)))
    ts2 = jnp.pad(edge_ts.astype(jnp.float32).reshape(-1, 1), ((0, E_pad - E), (0, 0)))
    out = pl.pallas_call(
        feat_encode_kernel,
        out_shape=jax.ShapeDtypeStruct((E_pad, H), jnp.float32),
        grid=(E_pad // e_tile,),
        in_specs=[pl.BlockSpec((e_tile, F), lambda i: (i, 0)),
                  pl.BlockSpec((e_tile, 1), lambda i: (i, 0)),
                  _full_spec(params["wt"].shape),
                  _full_spec(params["Wf"].shape),
                  _full_spec(params["Wt"].shape),
                  _full_spec(params["benc"].shape)],
        out_specs=pl.BlockSpec((e_tile, H), lambda i: (i, 0)),
        compiler_params=pltpu.CompilerParams(dimension_semantics=("parallel",)),
    )(feats, ts2, params["wt"], params["Wf"], params["Wt"], params["benc"])
    return out[:E]


def run_mixer(x, params, num_layers, b_tile=None):
    B, P, H = x.shape
    OUTP = params["head_w"].shape[1]
    bt = _pick_b_tile(B, P) if b_tile is None else b_tile
    assert bt % 8 == 0, "b_tile must be a multiple of 8"
    B_pad = _round_up(B, bt)
    if B_pad != B:
        # padded graphs are all-zero; LayerNorm(0) is finite (eps>0) and the
        # padded rows are sliced off below.
        x = jnp.pad(x, ((0, B_pad - B), (0, 0), (0, 0)))

    # Token-mix weights are in PyTorch [out, in] layout (== the token-major
    # operand); block-diagonalize over the bt graphs of a tile so token mixing
    # is ONE MXU matmul per layer.  Biases are tiled to match the row order
    # (row = b*tP + t / b*P + p).  Built once per call in the wrapper.
    tW0bd = _block_diag(params["tW0T"], bt)                     # [L, bt*tP, bt*P]
    tW1bd = _block_diag(params["tW1T"], bt)                     # [L, bt*P, bt*tP]
    tb0bd = jnp.tile(params["tb0"][:, :, None], (1, bt, 1))     # [L, bt*tP, 1]
    tb1bd = jnp.tile(params["tb1"][:, :, None], (1, bt, 1))     # [L, bt*P, 1]

    plist = [params["tln_g"], params["tln_b"], tW0bd, tb0bd, tW1bd, tb1bd,
             params["cln_g"], params["cln_b"], params["cW0"], params["cb0"],
             params["cW1"], params["cb1"],
             params["fln_g"], params["fln_b"], params["head_w"], params["head_b"]]

    # NOTE: the 16 constant-index-map weight operands total only tens of KiB
    # here, so default double-buffering is fine even on v7x's 64 MiB VMEM;
    # switch them to pipeline_mode=pl.Buffered(1) only if H/L/bt grow large.
    out = pl.pallas_call(
        functools.partial(mixer_kernel, num_layers),
        out_shape=jax.ShapeDtypeStruct((B_pad, OUTP), jnp.float32),
        grid=(B_pad // bt,),
        in_specs=[pl.BlockSpec((bt, P, H), lambda i: (i, 0, 0))]
                 + [_full_spec(p.shape) for p in plist],
        out_specs=pl.BlockSpec((bt, OUTP), lambda i: (i, 0)),
        compiler_params=pltpu.CompilerParams(dimension_semantics=("parallel",)),
    )(x, *plist)
    return out[:B]


def mlp_mixer_forward(edge_feats, edge_ts, batch_size, inds, params,
                      per_graph_size, num_layers, b_tile=None):
    H = params["Wf"].shape[1]
    edge_time_feats = run_feat_encode(edge_feats, edge_ts, params)
    # scatter: x = zeros; x[inds] = x[inds] + feats  (inds assumed unique, as in
    # the reference usage; duplicates would be last-write-wins in torch too).
    x = jnp.zeros((batch_size * per_graph_size, H), jnp.float32)
    x = x.at[inds].set(edge_time_feats)
    x = x.reshape(batch_size, per_graph_size, H)
    out = run_mixer(x, params, num_layers, b_tile=b_tile)
    return out[:, :params["out_dim"]]


# ------------------------------------------------------------------ params

def init_params(key, P, T, F, H, OUT, L,
                token_expansion_factor=0.5, channel_expansion_factor=4):
    tP = int(token_expansion_factor * P)
    cH = int(channel_expansion_factor * H)
    OUT_PAD = _round_up(OUT, 128)                 # lane-dense head output
    keys = iter(jax.random.split(key, 8 * L + 16))

    def lin(fan_in, fan_out):
        kw, kb = jax.random.split(next(keys))
        bound = 1.0 / math.sqrt(fan_in)
        W = jax.random.uniform(kw, (fan_in, fan_out), jnp.float32, -bound, bound)
        b = jax.random.uniform(kb, (fan_out,), jnp.float32, -bound, bound)
        return W, b

    # TimeEncode (fixed, non-trainable): w = 1/10^linspace(0,9,T), bias = 0
    wt = jnp.asarray(1.0 / 10 ** np.linspace(0, 9, T, dtype=np.float32)).reshape(1, T)
    # FeatEncode linear (F+T -> H); concat order is [edge_feats | time_feats]
    Wenc, benc = lin(F + T, H)
    Wf, Wt = Wenc[:F], Wenc[F:]

    tW0Ts, tb0s, tW1Ts, tb1s = [], [], [], []
    cW0s, cb0s, cW1s, cb1s = [], [], [], []
    for _ in range(L):
        w, b = lin(P, tP);  tW0Ts.append(w.T); tb0s.append(b)        # W0^T: [tP, P]
        w, b = lin(tP, P);  tW1Ts.append(w.T); tb1s.append(b)        # W1^T: [P, tP]
        w, b = lin(H, cH);  cW0s.append(w);    cb0s.append(b.reshape(1, cH))
        w, b = lin(cH, H);  cW1s.append(w);    cb1s.append(b.reshape(1, H))

    hW, hb = lin(H, OUT)
    hW = jnp.pad(hW, ((0, 0), (0, OUT_PAD - OUT)))
    hb = jnp.pad(hb, (0, OUT_PAD - OUT)).reshape(1, OUT_PAD)

    stk = lambda xs: jnp.stack(xs, axis=0)
    mm = lambda a: a.astype(MATMUL_DTYPE)         # MXU-operand weights in bf16
    return dict(
        out_dim=OUT,
        wt=wt, Wf=mm(Wf), Wt=mm(Wt), benc=benc.reshape(1, H),
        tln_g=jnp.ones((L, 1, H)), tln_b=jnp.zeros((L, 1, H)),
        cln_g=jnp.ones((L, 1, H)), cln_b=jnp.zeros((L, 1, H)),
        tW0T=mm(stk(tW0Ts)), tb0=stk(tb0s), tW1T=mm(stk(tW1Ts)), tb1=stk(tb1s),
        cW0=mm(stk(cW0s)), cb0=stk(cb0s), cW1=mm(stk(cW1s)), cb1=stk(cb1s),
        fln_g=jnp.ones((1, H)), fln_b=jnp.zeros((1, H)),
        head_w=mm(hW), head_b=hb,
    )


# ------------------------------------------------------------------ main

if __name__ == "__main__":
    B = 16                # batch_size (2 batch tiles of 8 graphs -> both v7x TCs busy)
    P = 8                 # per_graph_size
    T = 16                # time_channels
    F = 16                # input_channels (edge feature dim)
    H = 32                # hidden_channels
    OUT = 8               # out_channels
    L = 2                 # num_layers
    E = 100               # number of edges (<= B * P)

    key = jax.random.PRNGKey(0)
    k_feats, k_ts, k_inds, k_params = jax.random.split(key, 4)
    edge_feats = jax.random.normal(k_feats, (E, F), jnp.float32)
    edge_ts = jax.random.uniform(k_ts, (E,), jnp.float32, 0.0, 100.0)
    inds = jax.random.permutation(k_inds, B * P)[:E]          # unique scatter indices
    params = init_params(k_params, P, T, F, H, OUT, L)

    out = mlp_mixer_forward(edge_feats, edge_ts, B, inds, params, P, L)
    out = jax.block_until_ready(out)
    assert out.shape == (B, OUT) and out.dtype == jnp.float32
    assert bool(jnp.all(jnp.isfinite(out)))
    print("KERNEL_OK")
</pallas_src>

<mosaic_0001>
module attributes {stable_mosaic.version = 11 : i64} {
  func.func @feat_encode_kernel(%arg0: i32, %arg1: memref<104x16xf32, #tpu.memory_space<vmem>>, %arg2: memref<104x1xf32, #tpu.memory_space<vmem>>, %arg3: memref<1x16xf32, #tpu.memory_space<vmem>>, %arg4: memref<16x32xbf16, #tpu.memory_space<vmem>>, %arg5: memref<16x32xbf16, #tpu.memory_space<vmem>>, %arg6: memref<1x32xf32, #tpu.memory_space<vmem>>, %arg7: memref<104x32xf32, #tpu.memory_space<vmem>>) attributes {dimension_semantics = [#tpu.dimension_semantics<parallel>], iteration_bounds = array<i64: 1>, scalar_prefetch = 0 : i64, scratch_operands = 0 : i64, tpu.core_type = #tpu.core_type<tc>, window_params = [{transform_indices = @transform_0, window_bounds = array<i64: 104, 16>}, {transform_indices = @transform_1, window_bounds = array<i64: 104, 1>}, {pipeline_mode = #tpu.pipeline_mode<synchronous>, transform_indices = @transform_2, window_bounds = array<i64: 1, 16>}, {pipeline_mode = #tpu.pipeline_mode<synchronous>, transform_indices = @transform_3, window_bounds = array<i64: 16, 32>}, {pipeline_mode = #tpu.pipeline_mode<synchronous>, transform_indices = @transform_4, window_bounds = array<i64: 16, 32>}, {pipeline_mode = #tpu.pipeline_mode<synchronous>, transform_indices = @transform_5, window_bounds = array<i64: 1, 32>}, {transform_indices = @transform_6, window_bounds = array<i64: 104, 32>}]} {
    %c0 = arith.constant 0 : index
    %c0_0 = arith.constant 0 : index
    %0 = vector.load %arg2[%c0, %c0_0] : memref<104x1xf32, #tpu.memory_space<vmem>>, vector<104x1xf32>
    %c0_1 = arith.constant 0 : index
    %c0_2 = arith.constant 0 : index
    %1 = vector.load %arg3[%c0_1, %c0_2] : memref<1x16xf32, #tpu.memory_space<vmem>>, vector<1x16xf32>
    %2 = vector.broadcast %0 : vector<104x1xf32> to vector<104x16xf32>
    %3 = vector.broadcast %1 : vector<1x16xf32> to vector<104x16xf32>
    %4 = arith.mulf %2, %3 : vector<104x16xf32>
    %5 = math.cos %4 : vector<104x16xf32>
    %c0_3 = arith.constant 0 : index
    %c0_4 = arith.constant 0 : index
    %6 = vector.load %arg1[%c0_3, %c0_4] : memref<104x16xf32, #tpu.memory_space<vmem>>, vector<104x16xf32>
    %7 = arith.truncf %6 : vector<104x16xf32> to vector<104x16xbf16>
    %8 = arith.truncf %5 : vector<104x16xf32> to vector<104x16xbf16>
    %c0_5 = arith.constant 0 : index
    %c0_6 = arith.constant 0 : index
    %9 = vector.load %arg4[%c0_5, %c0_6] : memref<16x32xbf16, #tpu.memory_space<vmem>>, vector<16x32xbf16>
    %cst = arith.constant dense<0.000000e+00> : vector<104x32xf32>
    %10 = tpu.matmul %7, %9, %cst {dimension_numbers = #tpu.dot_dimension_numbers<[1], [0], [0], [1], [0, 0, 1, 1], [], []>} : vector<104x16xbf16>, vector<16x32xbf16>, vector<104x32xf32> -> vector<104x32xf32>
    %c0_7 = arith.constant 0 : index
    %c0_8 = arith.constant 0 : index
    %11 = vector.load %arg5[%c0_7, %c0_8] : memref<16x32xbf16, #tpu.memory_space<vmem>>, vector<16x32xbf16>
    %cst_9 = arith.constant dense<0.000000e+00> : vector<104x32xf32>
    %12 = tpu.matmul %8, %11, %cst_9 {dimension_numbers = #tpu.dot_dimension_numbers<[1], [0], [0], [1], [0, 0, 1, 1], [], []>} : vector<104x16xbf16>, vector<16x32xbf16>, vector<104x32xf32> -> vector<104x32xf32>
    %13 = arith.addf %10, %12 : vector<104x32xf32>
    %c0_10 = arith.constant 0 : index
    %c0_11 = arith.constant 0 : index
    %14 = vector.load %arg6[%c0_10, %c0_11] : memref<1x32xf32, #tpu.memory_space<vmem>>, vector<1x32xf32>
    %15 = vector.broadcast %14 : vector<1x32xf32> to vector<104x32xf32>
    %16 = arith.addf %13, %15 : vector<104x32xf32>
    %c0_12 = arith.constant 0 : index
    %c0_13 = arith.constant 0 : index
    %17 = vector.load %arg7[%c0_12, %c0_13] : memref<104x32xf32, #tpu.memory_space<vmem>>, vector<104x32xf32>
    tpu.vector_store %arg7[%c0_12, %c0_13], %16 {strides = array<i32>} : memref<104x32xf32, #tpu.memory_space<vmem>>, vector<104x32xf32>,
    return
  }
  func.func @transform_0(%arg0: i32) -> (i32, i32) {
    %c0_i32 = arith.constant 0 : i32
    %c0_i32_0 = arith.constant 0 : i32
    return %arg0, %c0_i32 : i32, i32
  }
  func.func @transform_1(%arg0: i32) -> (i32, i32) {
    %c0_i32 = arith.constant 0 : i32
    %c0_i32_0 = arith.constant 0 : i32
    return %arg0, %c0_i32 : i32, i32
  }
  func.func @transform_2(%arg0: i32) -> (i32, i32) {
    %c0_i32 = arith.constant 0 : i32
    %c0_i32_0 = arith.constant 0 : i32
    %c0_i32_1 = arith.constant 0 : i32
    return %c0_i32, %c0_i32_0 : i32, i32
  }
  func.func @transform_3(%arg0: i32) -> (i32, i32) {
    %c0_i32 = arith.constant 0 : i32
    %c0_i32_0 = arith.constant 0 : i32
    %c0_i32_1 = arith.constant 0 : i32
    return %c0_i32, %c0_i32_0 : i32, i32
  }
  func.func @transform_4(%arg0: i32) -> (i32, i32) {
    %c0_i32 = arith.constant 0 : i32
    %c0_i32_0 = arith.constant 0 : i32
    %c0_i32_1 = arith.constant 0 : i32
    return %c0_i32, %c0_i32_0 : i32, i32
  }
  func.func @transform_5(%arg0: i32) -> (i32, i32) {
    %c0_i32 = arith.constant 0 : i32
    %c0_i32_0 = arith.constant 0 : i32
    %c0_i32_1 = arith.constant 0 : i32
    return %c0_i32, %c0_i32_0 : i32, i32
  }
  func.func @transform_6(%arg0: i32) -> (i32, i32) {
    %c0_i32 = arith.constant 0 : i32
    %c0_i32_0 = arith.constant 0 : i32
    return %arg0, %c0_i32 : i32, i32
  }
}

</mosaic_0001>

<llo_original>
// kernel: tpu_custom_call.1
$region0: #{tpu_custom_call.1}
  #allocation0 [shape = 'u32[]', space=smem, size = 0x4, offset = 0x4, fixed_abs, tag = 'smem constant byte address 0x4 - core index']
  #allocation1 [shape = 'u32[144,128]{1,0:T(1,128)}', space=vmem, size = 0x12000, scoped, tag = 'internal scratch']
  %s0 = inlined_call_operand.vmem [shape: f32[104,16], index: 0, kind: input, shape index: {}]
  %s1 = inlined_call_operand.vmem [shape: f32[104,1], index: 1, kind: input, shape index: {}]
  %s2 = inlined_call_operand.vmem [shape: f32[1,16], index: 2, kind: input, shape index: {}]
  %s3 = inlined_call_operand.vmem [shape: bf16[16,32], index: 3, kind: input, shape index: {}]
  %s4 = inlined_call_operand.vmem [shape: bf16[16,32], index: 4, kind: input, shape index: {}]
  %s5 = inlined_call_operand.vmem [shape: f32[1,32], index: 5, kind: input, shape index: {}]
  %s6 = inlined_call_operand.vmem [shape: f32[104,32], index: 6, kind: output, shape index: {}]
  %s7 = sld [smem:[#allocation0]]
  $region34: #{tpu_custom_call.1} parent=0
    _
  %s9 = ssub.s32 1, %s7
  %s10 = scalar_select 0, %s9, %s7
  // Predicated region
  $region2: #{tpu_custom_call.1} parent=0 // pred_check
    _
  $region3: #{tpu_custom_call.1} parent=0 // pred_check_branch
    %12 = sbr.rel (0) target = $region5
  $region4: #{tpu_custom_call.1} parent=0 // pred_region
    _
  $region5: #{tpu_custom_call.1} parent=0 // pred_fallthru
    _
  // Predicated region
  $region6: #{tpu_custom_call.1} parent=0 // pred_check
    _
  $region7: #{tpu_custom_call.1} parent=0 // pred_check_branch
    %14 = sbr.rel (0) target = $region9
  $region8: #{tpu_custom_call.1} parent=0 // pred_region
    _
  $region9: #{tpu_custom_call.1} parent=0 // pred_fallthru
    _
  // Predicated region
  $region10: #{tpu_custom_call.1} parent=0 // pred_check
    _
  $region11: #{tpu_custom_call.1} parent=0 // pred_check_branch
    %16 = sbr.rel (0) target = $region13
  $region12: #{tpu_custom_call.1} parent=0 // pred_region
    _
  $region13: #{tpu_custom_call.1} parent=0 // pred_fallthru
    _
  // Predicated region
  $region14: #{tpu_custom_call.1} parent=0 // pred_check
    _
  $region15: #{tpu_custom_call.1} parent=0 // pred_check_branch
    %18 = sbr.rel (0) target = $region17
  $region16: #{tpu_custom_call.1} parent=0 // pred_region
    _
  $region17: #{tpu_custom_call.1} parent=0 // pred_fallthru
    _
  // Predicated region
  $region18: #{tpu_custom_call.1} parent=0 // pred_check
    _
  $region19: #{tpu_custom_call.1} parent=0 // pred_check_branch
    %20 = sbr.rel (0) target = $region21
  $region20: #{tpu_custom_call.1} parent=0 // pred_region
    _
  $region21: #{tpu_custom_call.1} parent=0 // pred_fallthru
    _
  // Predicated region
  $region22: #{tpu_custom_call.1} parent=0 // pred_check
    _
  $region23: #{tpu_custom_call.1} parent=0 // pred_check_branch
    %22 = sbr.rel (0) target = $region25
  $region24: #{tpu_custom_call.1} parent=0 // pred_region
    _
  $region25: #{tpu_custom_call.1} parent=0 // pred_fallthru
    _
  %v24 = vld [vmem:[%s1] sm:$0xff]
  %v25 = vld [vmem:[%s1 + $0x8] sm:$0xff]
  %v26 = vld [vmem:[%s1 + $0x10] sm:$0xff]
  %v27 = vld [vmem:[%s1 + $0x18] sm:$0xff]
  %v28 = vld [vmem:[%s1 + $0x20] sm:$0xff]
  %v29 = vld [vmem:[%s1 + $0x28] sm:$0xff]
  %v30 = vld [vmem:[%s1 + $0x30] sm:$0xff]
  %v31 = vld [vmem:[%s1 + $0x38] sm:$0xff]
  %v32 = vld [vmem:[%s1 + $0x40] sm:$0xff]
  %v33 = vld [vmem:[%s1 + $0x48] sm:$0xff]
  %v34 = vld [vmem:[%s1 + $0x50] sm:$0xff]
  %v35 = vld [vmem:[%s1 + $0x58] sm:$0xff]
  %v36 = vld [vmem:[%s1 + $0x60] sm:$0xff]
  %v37 = vld [vmem:[%s2] sm:$0x1]
  %39 = vset.pattern.permute.xlu0 0
  %40 = vperm.xlu0 %39, %v24
  %v41 = vpop.permute.xlu0 %40
  %44 = vset.pattern.permute.xlu0 0
  %45 = vperm.xlu0 %44, %v25
  %v46 = vpop.permute.xlu0 %45
  %49 = vset.pattern.permute.xlu0 0
  %50 = vperm.xlu0 %49, %v26
  %v51 = vpop.permute.xlu0 %50
  %54 = vset.pattern.permute.xlu0 0
  %55 = vperm.xlu0 %54, %v27
  %v56 = vpop.permute.xlu0 %55
  %59 = vset.pattern.permute.xlu0 0
  %60 = vperm.xlu0 %59, %v28
  %v61 = vpop.permute.xlu0 %60
  %64 = vset.pattern.permute.xlu0 0
  %65 = vperm.xlu0 %64, %v29
  %v66 = vpop.permute.xlu0 %65
  %69 = vset.pattern.permute.xlu0 0
  %70 = vperm.xlu0 %69, %v30
  %v71 = vpop.permute.xlu0 %70
  %74 = vset.pattern.permute.xlu0 0
  %75 = vperm.xlu0 %74, %v31
  %v76 = vpop.permute.xlu0 %75
  %79 = vset.pattern.permute.xlu0 0
  %80 = vperm.xlu0 %79, %v32
  %v81 = vpop.permute.xlu0 %80
  %84 = vset.pattern.permute.xlu0 0
  %85 = vperm.xlu0 %84, %v33
  %v86 = vpop.permute.xlu0 %85
  %89 = vset.pattern.permute.xlu0 0
  %90 = vperm.xlu0 %89, %v34
  %v91 = vpop.permute.xlu0 %90
  %94 = vset.pattern.permute.xlu0 0
  %95 = vperm.xlu0 %94, %v35
  %v96 = vpop.permute.xlu0 %95
  %99 = vset.pattern.permute.xlu0 0
  %100 = vperm.xlu0 %99, %v36
  %v101 = vpop.permute.xlu0 %100
  %v104 = vlaneseq
  %v105 = vshrl.u32 %v104, 7
  %v106 = vsub.s32 0, %v105
  %v107 = vrot.slane %v37, %v106
  %v109 = vmul.f32 %v41, %v107
  %v110 = vmul.f32 %v46, %v107
  %v111 = vmul.f32 %v51, %v107
  %v112 = vmul.f32 %v56, %v107
  %v113 = vmul.f32 %v61, %v107
  %v114 = vmul.f32 %v66, %v107
  %v115 = vmul.f32 %v71, %v107
  %v116 = vmul.f32 %v76, %v107
  %v117 = vmul.f32 %v81, %v107
  %v118 = vmul.f32 %v86, %v107
  %v119 = vmul.f32 %v91, %v107
  %v120 = vmul.f32 %v96, %v107
  %v121 = vmul.f32 %v101, %v107
  %v122 = vand.u32 2147483647, %v109
  %vm123 = vcmp.le.f32.partialorder %v122, 0.7853982
  %vm124 = vcmp.lt.s32.totalorder %v109, 0
  %v125 = vand.u32 %v109, 2139095040
  %v126 = vshrl.u32 %v125, 23
  %v127 = vsub.s32 %v126, 127
  %v128 = vand.u32 2147483647, %v109
  %v129 = vand.u32 %v128, 8388607
  %v130 = vor.u32 %v129, 8388608
  %v131 = vsub.s32 0, %v130
  %v132 = vadd.s32 %v127, 1
  %vm133 = vcmp.gt.s32.totalorder %v132, 0
  %v134 = vsel %vm133, %v132, 0
  %v135 = vshrl.u32 %v134, 5
  %v136 = vand.u32 %v134, 31
  %v137 = vsub.s32 32, %v136
  %v138 = vshrl.u32 683565275, %v137
  %v139 = vshll.u32 683565275, %v136
  %v140 = vshrl.u32 2475754826, %v137
  %v141 = vor.u32 %v139, %v140
  %v142 = vshll.u32 2475754826, %v136
  %v143 = vshrl.u32 2131351028, %v137
  %v144 = vor.u32 %v142, %v143
  %v145 = vshll.u32 2131351028, %v136
  %v146 = vshrl.u32 2102212464, %v137
  %v147 = vor.u32 %v145, %v146
  %v148 = vshll.u32 2102212464, %v136
  %v149 = vshrl.u32 920167782, %v137
  %v150 = vor.u32 %v148, %v149
  %v151 = vshll.u32 920167782, %v136
  %v152 = vshrl.u32 1326507024, %v137
  %v153 = vor.u32 %v151, %v152
  %vm154 = vcmp.lt.s32.totalorder %v135, 1
  %vm155 = vcmp.lt.s32.totalorder %v135, 2
  %vm156 = vcmp.lt.s32.totalorder %v135, 3
  %vm157 = vcmp.lt.s32.totalorder %v135, 4
  %v158 = vsel %vm154, %v138, %v141
  %v159 = vsel %vm157, %v147, 2102212464
  %v160 = vsel %vm156, %v144, %v159
  %v161 = vsel %vm155, %v158, %v160
  %v162 = vsel %vm154, %v141, %v144
  %v163 = vsel %vm157, %v150, 920167782
  %v164 = vsel %vm156, %v147, %v163
  %v165 = vsel %vm155, %v162, %v164
  %v166 = vsel %vm154, %v144, %v147
  %v167 = vsel %vm157, %v153, 1326507024
  %v168 = vsel %vm156, %v150, %v167
  %v169 = vsel %vm155, %v166, %v168
  %v170 = vshll.u32 %v130, 8
  %v171 = vmul.u32.u64.compose %v170, %v169
  %v172 = vextract.low.u32 %v171
  %v173 = vextract.high.u32 %v171
  %v174 = vmul.u32.u64.compose %v170, %v165
  %v175 = vextract.low.u32 %v174
  %v176 = vextract.high.u32 %v174
  %v177 = vmul.u32 %v170, %v161
  %v178 = vadd.s32 %v173, %v175
  %vm179 = vc.u32 %v173, %v175
  %v180 = vadd.s32 %v176, 1
  %v181 = vsel %vm179, %v180, %v176
  %v182 = vadd.s32 %v177, %v181
  %v183 = vadd.s32 %v182, 536870912
  %v184 = vshrl.u32 %v183, 30
  %v185 = vshll.u32 %v184, 30
  %v186 = vsub.s32 %v182, %v185
  %vm187 = vcmp.lt.s32.totalorder %v186, 0
  %v188 = vsub.s32 0, %v186
  %v189 = vsel %vm187, %v188, %v186
  %v190 = vclz %v189
  %v191 = vsub.s32 %v190, 2
  %vm192 = vcmp.gt.s32.totalorder 0, %v191
  %v193 = vsel %vm192, 0, %v191
  %v194 = vsub.s32 32, %v193
  %v195 = vshll.u32 %v186, %v193
  %v196 = vshrl.u32 %v178, %v194
  %v197 = vor.u32 %v195, %v196
  %v198 = vsub.s32 4294967266, %v193
  %v199 = vadd.s32 %v198, 127
  %v200 = vshll.u32 %v199, 23
  %v201 = vor.u32 4788187, %v200
  %v202 = vand.u32 2147483647, %v201
  %v204 = vcvt.s32.f32 %v197
  %v205 = vmul.f32 %v204, %v202
  %v206 = vxor.u32 %v205, 2147483648
  %v207 = vsel %vm124, %v206, %v205
  %v208 = vsub.s32 4, %v184
  %v209 = vsel %vm124, %v208, %v184
  %v210 = vsel %vm123, %v109, %v207
  %v211 = vsel %vm123, 0, %v209
  %v212 = vcosq.f32.pop %v210
  %v213 = vsinq.f32.pop %v210
  %vm214 = vweird.f32 %v109
  %v215 = vand.u32 %v211, 3
  %vm216 = vcmp.lt.s32.totalorder %v215, 2
  %vm217 = vcmp.eq.s32.totalorder %v215, 0
  %v218 = vxor.u32 %v213, 2147483648
  %v219 = vsel %vm217, %v212, %v218
  %vm220 = vcmp.eq.s32.totalorder %v215, 2
  %v221 = vxor.u32 %v212, 2147483648
  %v222 = vsel %vm220, %v221, %v213
  %v223 = vsel %vm216, %v219, %v222
  %v224 = vsel %vm214, nan, %v223
  %v225 = vand.u32 2147483647, %v110
  %vm226 = vcmp.le.f32.partialorder %v225, 0.7853982
  %vm227 = vcmp.lt.s32.totalorder %v110, 0
  %v228 = vand.u32 %v110, 2139095040
  %v229 = vshrl.u32 %v228, 23
  %v230 = vsub.s32 %v229, 127
  %v231 = vand.u32 2147483647, %v110
  %v232 = vand.u32 %v231, 8388607
  %v233 = vor.u32 %v232, 8388608
  %v234 = vsub.s32 0, %v233
  %v235 = vadd.s32 %v230, 1
  %vm236 = vcmp.gt.s32.totalorder %v235, 0
  %v237 = vsel %vm236, %v235, 0
  %v238 = vshrl.u32 %v237, 5
  %v239 = vand.u32 %v237, 31
  %v240 = vsub.s32 32, %v239
  %v241 = vshrl.u32 683565275, %v240
  %v242 = vshll.u32 683565275, %v239
  %v243 = vshrl.u32 2475754826, %v240
  %v244 = vor.u32 %v242, %v243
  %v245 = vshll.u32 2475754826, %v239
  %v246 = vshrl.u32 2131351028, %v240
  %v247 = vor.u32 %v245, %v246
  %v248 = vshll.u32 2131351028, %v239
  %v249 = vshrl.u32 2102212464, %v240
  %v250 = vor.u32 %v248, %v249
  %v251 = vshll.u32 2102212464, %v239
  %v252 = vshrl.u32 920167782, %v240
  %v253 = vor.u32 %v251, %v252
  %v254 = vshll.u32 920167782, %v239
  %v255 = vshrl.u32 1326507024, %v240
  %v256 = vor.u32 %v254, %v255
  %vm257 = vcmp.lt.s32.totalorder %v238, 1
  %vm258 = vcmp.lt.s32.totalorder %v238, 2
  %vm259 = vcmp.lt.s32.totalorder %v238, 3
  %vm260 = vcmp.lt.s32.totalorder %v238, 4
  %v261 = vsel %vm257, %v241, %v244
  %v262 = vsel %vm260, %v250, 2102212464
  %v263 = vsel %vm259, %v247, %v262
  %v264 = vsel %vm258, %v261, %v263
  %v265 = vsel %vm257, %v244, %v247
  %v266 = vsel %vm260, %v253, 920167782
  %v267 = vsel %vm259, %v250, %v266
  %v268 = vsel %vm258, %v265, %v267
  %v269 = vsel %vm257, %v247, %v250
  %v270 = vsel %vm260, %v256, 1326507024
  %v271 = vsel %vm259, %v253, %v270
  %v272 = vsel %vm258, %v269, %v271
  %v273 = vshll.u32 %v233, 8
  %v274 = vmul.u32.u64.compose %v273, %v272
  %v275 = vextract.low.u32 %v274
  %v276 = vextract.high.u32 %v274
  %v277 = vmul.u32.u64.compose %v273, %v268
  %v278 = vextract.low.u32 %v277
  %v279 = vextract.high.u32 %v277
  %v280 = vmul.u32 %v273, %v264
  %v281 = vadd.s32 %v276, %v278
  %vm282 = vc.u32 %v276, %v278
  %v283 = vadd.s32 %v279, 1
  %v284 = vsel %vm282, %v283, %v279
  %v285 = vadd.s32 %v280, %v284
  %v286 = vadd.s32 %v285, 536870912
  %v287 = vshrl.u32 %v286, 30
  %v288 = vshll.u32 %v287, 30
  %v289 = vsub.s32 %v285, %v288
  %vm290 = vcmp.lt.s32.totalorder %v289, 0
  %v291 = vsub.s32 0, %v289
  %v292 = vsel %vm290, %v291, %v289
  %v293 = vclz %v292
  %v294 = vsub.s32 %v293, 2
  %vm295 = vcmp.gt.s32.totalorder 0, %v294
  %v296 = vsel %vm295, 0, %v294
  %v297 = vsub.s32 32, %v296
  %v298 = vshll.u32 %v289, %v296
  %v299 = vshrl.u32 %v281, %v297
  %v300 = vor.u32 %v298, %v299
  %v301 = vsub.s32 4294967266, %v296
  %v302 = vadd.s32 %v301, 127
  %v303 = vshll.u32 %v302, 23
  %v304 = vor.u32 4788187, %v303
  %v305 = vand.u32 2147483647, %v304
  %v307 = vcvt.s32.f32 %v300
  %v308 = vmul.f32 %v307, %v305
  %v309 = vxor.u32 %v308, 2147483648
  %v310 = vsel %vm227, %v309, %v308
  %v311 = vsub.s32 4, %v287
  %v312 = vsel %vm227, %v311, %v287
  %v313 = vsel %vm226, %v110, %v310
  %v314 = vsel %vm226, 0, %v312
  %v315 = vcosq.f32.pop %v313
  %v316 = vsinq.f32.pop %v313
  %vm317 = vweird.f32 %v110
  %v318 = vand.u32 %v314, 3
  %vm319 = vcmp.lt.s32.totalorder %v318, 2
  %vm320 = vcmp.eq.s32.totalorder %v318, 0
  %v321 = vxor.u32 %v316, 2147483648
  %v322 = vsel %vm320, %v315, %v321
  %vm323 = vcmp.eq.s32.totalorder %v318, 2
  %v324 = vxor.u32 %v315, 2147483648
  %v325 = vsel %vm323, %v324, %v316
  %v326 = vsel %vm319, %v322, %v325
  %v327 = vsel %vm317, nan, %v326
  %v328 = vand.u32 2147483647, %v111
  %vm329 = vcmp.le.f32.partialorder %v328, 0.7853982
  %vm330 = vcmp.lt.s32.totalorder %v111, 0
  %v331 = vand.u32 %v111, 2139095040
  %v332 = vshrl.u32 %v331, 23
  %v333 = vsub.s32 %v332, 127
  %v334 = vand.u32 2147483647, %v111
  %v335 = vand.u32 %v334, 8388607
  %v336 = vor.u32 %v335, 8388608
  %v337 = vsub.s32 0, %v336
  %v338 = vadd.s32 %v333, 1
  %vm339 = vcmp.gt.s32.totalorder %v338, 0
  %v340 = vsel %vm339, %v338, 0
  %v341 = vshrl.u32 %v340, 5
  %v342 = vand.u32 %v340, 31
  %v343 = vsub.s32 32, %v342
  %v344 = vshrl.u32 683565275, %v343
  %v345 = vshll.u32 683565275, %v342
  %v346 = vshrl.u32 2475754826, %v343
  %v347 = vor.u32 %v345, %v346
  %v348 = vshll.u32 2475754826, %v342
  %v349 = vshrl.u32 2131351028, %v343
  %v350 = vor.u32 %v348, %v349
  %v351 = vshll.u32 2131351028, %v342
  %v352 = vshrl.u32 2102212464, %v343
  %v353 = vor.u32 %v351, %v352
  %v354 = vshll.u32 2102212464, %v342
  %v355 = vshrl.u32 920167782, %v343
  %v356 = vor.u32 %v354, %v355
  %v357 = vshll.u32 920167782, %v342
  %v358 = vshrl.u32 1326507024, %v343
  %v359 = vor.u32 %v357, %v358
  %vm360 = vcmp.lt.s32.totalorder %v341, 1
  %vm361 = vcmp.lt.s32.totalorder %v341, 2
  %vm362 = vcmp.lt.s32.totalorder %v341, 3
  %vm363 = vcmp.lt.s32.totalorder %v341, 4
  %v364 = vsel %vm360, %v344, %v347
  %v365 = vsel %vm363, %v353, 2102212464
  %v366 = vsel %vm362, %v350, %v365
  %v367 = vsel %vm361, %v364, %v366
  %v368 = vsel %vm360, %v347, %v350
  %v369 = vsel %vm363, %v356, 920167782
  %v370 = vsel %vm362, %v353, %v369
  %v371 = vsel %vm361, %v368, %v370
  %v372 = vsel %vm360, %v350, %v353
  %v373 = vsel %vm363, %v359, 1326507024
  %v374 = vsel %vm362, %v356, %v373
  %v375 = vsel %vm361, %v372, %v374
  %v376 = vshll.u32 %v336, 8
  %v377 = vmul.u32.u64.compose %v376, %v375
  %v378 = vextract.low.u32 %v377
  %v379 = vextract.high.u32 %v377
  %v380 = vmul.u32.u64.compose %v376, %v371
  %v381 = vextract.low.u32 %v380
  %v382 = vextract.high.u32 %v380
  %v383 = vmul.u32 %v376, %v367
  %v384 = vadd.s32 %v379, %v381
  %vm385 = vc.u32 %v379, %v381
  %v386 = vadd.s32 %v382, 1
  %v387 = vsel %vm385, %v386, %v382
  %v388 = vadd.s32 %v383, %v387
  %v389 = vadd.s32 %v388, 536870912
  %v390 = vshrl.u32 %v389, 30
  %v391 = vshll.u32 %v390, 30
  %v392 = vsub.s32 %v388, %v391
  %vm393 = vcmp.lt.s32.totalorder %v392, 0
  %v394 = vsub.s32 0, %v392
  %v395 = vsel %vm393, %v394, %v392
  %v396 = vclz %v395
  %v397 = vsub.s32 %v396, 2
  %vm398 = vcmp.gt.s32.totalorder 0, %v397
  %v399 = vsel %vm398, 0, %v397
  %v400 = vsub.s32 32, %v399
  %v401 = vshll.u32 %v392, %v399
  %v402 = vshrl.u32 %v384, %v400
  %v403 = vor.u32 %v401, %v402
  %v404 = vsub.s32 4294967266, %v399
  %v405 = vadd.s32 %v404, 127
  %v406 = vshll.u32 %v405, 23
  %v407 = vor.u32 4788187, %v406
  %v408 = vand.u32 2147483647, %v407
  %v410 = vcvt.s32.f32 %v403
  %v411 = vmul.f32 %v410, %v408
  %v412 = vxor.u32 %v411, 2147483648
  %v413 = vsel %vm330, %v412, %v411
  %v414 = vsub.s32 4, %v390
  %v415 = vsel %vm330, %v414, %v390
  %v416 = vsel %vm329, %v111, %v413
  %v417 = vsel %vm329, 0, %v415
  %v418 = vcosq.f32.pop %v416
  %v419 = vsinq.f32.pop %v416
  %vm420 = vweird.f32 %v111
  %v421 = vand.u32 %v417, 3
  %vm422 = vcmp.lt.s32.totalorder %v421, 2
  %vm423 = vcmp.eq.s32.totalorder %v421, 0
  %v424 = vxor.u32 %v419, 2147483648
  %v425 = vsel %vm423, %v418, %v424
  %vm426 = vcmp.eq.s32.totalorder %v421, 2
  %v427 = vxor.u32 %v418, 2147483648
  %v428 = vsel %vm426, %v427, %v419
  %v429 = vsel %vm422, %v425, %v428
  %v430 = vsel %vm420, nan, %v429
  %v431 = vand.u32 2147483647, %v112
  %vm432 = vcmp.le.f32.partialorder %v431, 0.7853982
  %vm433 = vcmp.lt.s32.totalorder %v112, 0
  %v434 = vand.u32 %v112, 2139095040
  %v435 = vshrl.u32 %v434, 23
  %v436 = vsub.s32 %v435, 127
  %v437 = vand.u32 2147483647, %v112
  %v438 = vand.u32 %v437, 8388607
  %v439 = vor.u32 %v438, 8388608
  %v440 = vsub.s32 0, %v439
  %v441 = vadd.s32 %v436, 1
  %vm442 = vcmp.gt.s32.totalorder %v441, 0
  %v443 = vsel %vm442, %v441, 0
  %v444 = vshrl.u32 %v443, 5
  %v445 = vand.u32 %v443, 31
  %v446 = vsub.s32 32, %v445
  %v447 = vshrl.u32 683565275, %v446
  %v448 = vshll.u32 683565275, %v445
  %v449 = vshrl.u32 2475754826, %v446
  %v450 = vor.u32 %v448, %v449
  %v451 = vshll.u32 2475754826, %v445
  %v452 = vshrl.u32 2131351028, %v446
  %v453 = vor.u32 %v451, %v452
  %v454 = vshll.u32 2131351028, %v445
  %v455 = vshrl.u32 2102212464, %v446
  %v456 = vor.u32 %v454, %v455
  %v457 = vshll.u32 2102212464, %v445
  %v458 = vshrl.u32 920167782, %v446
  %v459 = vor.u32 %v457, %v458
  %v460 = vshll.u32 920167782, %v445
  %v461 = vshrl.u32 1326507024, %v446
  %v462 = vor.u32 %v460, %v461
  %vm463 = vcmp.lt.s32.totalorder %v444, 1
  %vm464 = vcmp.lt.s32.totalorder %v444, 2
  %vm465 = vcmp.lt.s32.totalorder %v444, 3
  %vm466 = vcmp.lt.s32.totalorder %v444, 4
  %v467 = vsel %vm463, %v447, %v450
  %v468 = vsel %vm466, %v456, 2102212464
  %v469 = vsel %vm465, %v453, %v468
  %v470 = vsel %vm464, %v467, %v469
  %v471 = vsel %vm463, %v450, %v453
  %v472 = vsel %vm466, %v459, 920167782
  %v473 = vsel %vm465, %v456, %v472
  %v474 = vsel %vm464, %v471, %v473
  %v475 = vsel %vm463, %v453, %v456
  %v476 = vsel %vm466, %v462, 1326507024
  %v477 = vsel %vm465, %v459, %v476
  %v478 = vsel %vm464, %v475, %v477
  %v479 = vshll.u32 %v439, 8
  %v480 = vmul.u32.u64.compose %v479, %v478
  %v481 = vextract.low.u32 %v480
  %v482 = vextract.high.u32 %v480
  %v483 = vmul.u32.u64.compose %v479, %v474
  %v484 = vextract.low.u32 %v483
  %v485 = vextract.high.u32 %v483
  %v486 = vmul.u32 %v479, %v470
  %v487 = vadd.s32 %v482, %v484
  %vm488 = vc.u32 %v482, %v484
  %v489 = vadd.s32 %v485, 1
  %v490 = vsel %vm488, %v489, %v485
  %v491 = vadd.s32 %v486, %v490
  %v492 = vadd.s32 %v491, 536870912
  %v493 = vshrl.u32 %v492, 30
  %v494 = vshll.u32 %v493, 30
  %v495 = vsub.s32 %v491, %v494
  %vm496 = vcmp.lt.s32.totalorder %v495, 0
  %v497 = vsub.s32 0, %v495
  %v498 = vsel %vm496, %v497, %v495
  %v499 = vclz %v498
  %v500 = vsub.s32 %v499, 2
  %vm501 = vcmp.gt.s32.totalorder 0, %v500
  %v502 = vsel %vm501, 0, %v500
  %v503 = vsub.s32 32, %v502
  %v504 = vshll.u32 %v495, %v502
  %v505 = vshrl.u32 %v487, %v503
  %v506 = vor.u32 %v504, %v505
  %v507 = vsub.s32 4294967266, %v502
  %v508 = vadd.s32 %v507, 127
  %v509 = vshll.u32 %v508, 23
  %v510 = vor.u32 4788187, %v509
  %v511 = vand.u32 2147483647, %v510
  %v513 = vcvt.s32.f32 %v506
  %v514 = vmul.f32 %v513, %v511
  %v515 = vxor.u32 %v514, 2147483648
  %v516 = vsel %vm433, %v515, %v514
  %v517 = vsub.s32 4, %v493
  %v518 = vsel %vm433, %v517, %v493
  %v519 = vsel %vm432, %v112, %v516
  %v520 = vsel %vm432, 0, %v518
  %v521 = vcosq.f32.pop %v519
  %v522 = vsinq.f32.pop %v519
  %vm523 = vweird.f32 %v112
  %v524 = vand.u32 %v520, 3
  %vm525 = vcmp.lt.s32.totalorder %v524, 2
  %vm526 = vcmp.eq.s32.totalorder %v524, 0
  %v527 = vxor.u32 %v522, 2147483648
  %v528 = vsel %vm526, %v521, %v527
  %vm529 = vcmp.eq.s32.totalorder %v524, 2
  %v530 = vxor.u32 %v521, 2147483648
  %v531 = vsel %vm529, %v530, %v522
  %v532 = vsel %vm525, %v528, %v531
  %v533 = vsel %vm523, nan, %v532
  %v534 = vand.u32 2147483647, %v113
  %vm535 = vcmp.le.f32.partialorder %v534, 0.7853982
  %vm536 = vcmp.lt.s32.totalorder %v113, 0
  %v537 = vand.u32 %v113, 2139095040
  %v538 = vshrl.u32 %v537, 23
  %v539 = vsub.s32 %v538, 127
  %v540 = vand.u32 2147483647, %v113
  %v541 = vand.u32 %v540, 8388607
  %v542 = vor.u32 %v541, 8388608
  %v543 = vsub.s32 0, %v542
  %v544 = vadd.s32 %v539, 1
  %vm545 = vcmp.gt.s32.totalorder %v544, 0
  %v546 = vsel %vm545, %v544, 0
  %v547 = vshrl.u32 %v546, 5
  %v548 = vand.u32 %v546, 31
  %v549 = vsub.s32 32, %v548
  %v550 = vshrl.u32 683565275, %v549
  %v551 = vshll.u32 683565275, %v548
  %v552 = vshrl.u32 2475754826, %v549
  %v553 = vor.u32 %v551, %v552
  %v554 = vshll.u32 2475754826, %v548
  %v555 = vshrl.u32 2131351028, %v549
  %v556 = vor.u32 %v554, %v555
  %v557 = vshll.u32 2131351028, %v548
  %v558 = vshrl.u32 2102212464, %v549
  %v559 = vor.u32 %v557, %v558
  %v560 = vshll.u32 2102212464, %v548
  %v561 = vshrl.u32 920167782, %v549
  %v562 = vor.u32 %v560, %v561
  %v563 = vshll.u32 920167782, %v548
  %v564 = vshrl.u32 1326507024, %v549
  %v565 = vor.u32 %v563, %v564
  %vm566 = vcmp.lt.s32.totalorder %v547, 1
  %vm567 = vcmp.lt.s32.totalorder %v547, 2
  %vm568 = vcmp.lt.s32.totalorder %v547, 3
  %vm569 = vcmp.lt.s32.totalorder %v547, 4
  %v570 = vsel %vm566, %v550, %v553
  %v571 = vsel %vm569, %v559, 2102212464
  %v572 = vsel %vm568, %v556, %v571
  %v573 = vsel %vm567, %v570, %v572
  %v574 = vsel %vm566, %v553, %v556
  %v575 = vsel %vm569, %v562, 920167782
  %v576 = vsel %vm568, %v559, %v575
  %v577 = vsel %vm567, %v574, %v576
  %v578 = vsel %vm566, %v556, %v559
  %v579 = vsel %vm569, %v565, 1326507024
  %v580 = vsel %vm568, %v562, %v579
  %v581 = vsel %vm567, %v578, %v580
  %v582 = vshll.u32 %v542, 8
  %v583 = vmul.u32.u64.compose %v582, %v581
  %v584 = vextract.low.u32 %v583
  %v585 = vextract.high.u32 %v583
  %v586 = vmul.u32.u64.compose %v582, %v577
  %v587 = vextract.low.u32 %v586
  %v588 = vextract.high.u32 %v586
  %v589 = vmul.u32 %v582, %v573
  %v590 = vadd.s32 %v585, %v587
  %vm591 = vc.u32 %v585, %v587
  %v592 = vadd.s32 %v588, 1
  %v593 = vsel %vm591, %v592, %v588
  %v594 = vadd.s32 %v589, %v593
  %v595 = vadd.s32 %v594, 536870912
  %v596 = vshrl.u32 %v595, 30
  %v597 = vshll.u32 %v596, 30
  %v598 = vsub.s32 %v594, %v597
  %vm599 = vcmp.lt.s32.totalorder %v598, 0
  %v600 = vsub.s32 0, %v598
  %v601 = vsel %vm599, %v600, %v598
  %v602 = vclz %v601
  %v603 = vsub.s32 %v602, 2
  %vm604 = vcmp.gt.s32.totalorder 0, %v603
  %v605 = vsel %vm604, 0, %v603
  %v606 = vsub.s32 32, %v605
  %v607 = vshll.u32 %v598, %v605
  %v608 = vshrl.u32 %v590, %v606
  %v609 = vor.u32 %v607, %v608
  %v610 = vsub.s32 4294967266, %v605
  %v611 = vadd.s32 %v610, 127
  %v612 = vshll.u32 %v611, 23
  %v613 = vor.u32 4788187, %v612
  %v614 = vand.u32 2147483647, %v613
  %v616 = vcvt.s32.f32 %v609
  %v617 = vmul.f32 %v616, %v614
  %v618 = vxor.u32 %v617, 2147483648
  %v619 = vsel %vm536, %v618, %v617
  %v620 = vsub.s32 4, %v596
  %v621 = vsel %vm536, %v620, %v596
  %v622 = vsel %vm535, %v113, %v619
  %v623 = vsel %vm535, 0, %v621
  %v624 = vcosq.f32.pop %v622
  %v625 = vsinq.f32.pop %v622
  %vm626 = vweird.f32 %v113
  %v627 = vand.u32 %v623, 3
  %vm628 = vcmp.lt.s32.totalorder %v627, 2
  %vm629 = vcmp.eq.s32.totalorder %v627, 0
  %v630 = vxor.u32 %v625, 2147483648
  %v631 = vsel %vm629, %v624, %v630
  %vm632 = vcmp.eq.s32.totalorder %v627, 2
  %v633 = vxor.u32 %v624, 2147483648
  %v634 = vsel %vm632, %v633, %v625
  %v635 = vsel %vm628, %v631, %v634
  %v636 = vsel %vm626, nan, %v635
  %v637 = vand.u32 2147483647, %v114
  %vm638 = vcmp.le.f32.partialorder %v637, 0.7853982
  %vm639 = vcmp.lt.s32.totalorder %v114, 0
  %v640 = vand.u32 %v114, 2139095040
  %v641 = vshrl.u32 %v640, 23
  %v642 = vsub.s32 %v641, 127
  %v643 = vand.u32 2147483647, %v114
  %v644 = vand.u32 %v643, 8388607
  %v645 = vor.u32 %v644, 8388608
  %v646 = vsub.s32 0, %v645
  %v647 = vadd.s32 %v642, 1
  %vm648 = vcmp.gt.s32.totalorder %v647, 0
  %v649 = vsel %vm648, %v647, 0
  %v650 = vshrl.u32 %v649, 5
  %v651 = vand.u32 %v649, 31
  %v652 = vsub.s32 32, %v651
  %v653 = vshrl.u32 683565275, %v652
  %v654 = vshll.u32 683565275, %v651
  %v655 = vshrl.u32 2475754826, %v652
  %v656 = vor.u32 %v654, %v655
  %v657 = vshll.u32 2475754826, %v651
  %v658 = vshrl.u32 2131351028, %v652
  %v659 = vor.u32 %v657, %v658
  %v660 = vshll.u32 2131351028, %v651
  %v661 = vshrl.u32 2102212464, %v652
  %v662 = vor.u32 %v660, %v661
  %v663 = vshll.u32 2102212464, %v651
  %v664 = vshrl.u32 920167782, %v652
  %v665 = vor.u32 %v663, %v664
  %v666 = vshll.u32 920167782, %v651
  %v667 = vshrl.u32 1326507024, %v652
  %v668 = vor.u32 %v666, %v667
  %vm669 = vcmp.lt.s32.totalorder %v650, 1
  %vm670 = vcmp.lt.s32.totalorder %v650, 2
  %vm671 = vcmp.lt.s32.totalorder %v650, 3
  %vm672 = vcmp.lt.s32.totalorder %v650, 4
  %v673 = vsel %vm669, %v653, %v656
  %v674 = vsel %vm672, %v662, 2102212464
  %v675 = vsel %vm671, %v659, %v674
  %v676 = vsel %vm670, %v673, %v675
  %v677 = vsel %vm669, %v656, %v659
  %v678 = vsel %vm672, %v665, 920167782
  %v679 = vsel %vm671, %v662, %v678
  %v680 = vsel %vm670, %v677, %v679
  %v681 = vsel %vm669, %v659, %v662
  %v682 = vsel %vm672, %v668, 1326507024
  %v683 = vsel %vm671, %v665, %v682
  %v684 = vsel %vm670, %v681, %v683
  %v685 = vshll.u32 %v645, 8
  %v686 = vmul.u32.u64.compose %v685, %v684
  %v687 = vextract.low.u32 %v686
  %v688 = vextract.high.u32 %v686
  %v689 = vmul.u32.u64.compose %v685, %v680
  %v690 = vextract.low.u32 %v689
  %v691 = vextract.high.u32 %v689
  %v692 = vmul.u32 %v685, %v676
  %v693 = vadd.s32 %v688, %v690
  %vm694 = vc.u32 %v688, %v690
  %v695 = vadd.s32 %v691, 1
  %v696 = vsel %vm694, %v695, %v691
  %v697 = vadd.s32 %v692, %v696
  %v698 = vadd.s32 %v697, 536870912
  %v699 = vshrl.u32 %v698, 30
  %v700 = vshll.u32 %v699, 30
  %v701 = vsub.s32 %v697, %v700
  %vm702 = vcmp.lt.s32.totalorder %v701, 0
  %v703 = vsub.s32 0, %v701
  %v704 = vsel %vm702, %v703, %v701
  %v705 = vclz %v704
  %v706 = vsub.s32 %v705, 2
  %vm707 = vcmp.gt.s32.totalorder 0, %v706
  %v708 = vsel %vm707, 0, %v706
  %v709 = vsub.s32 32, %v708
  %v710 = vshll.u32 %v701, %v708
  %v711 = vshrl.u32 %v693, %v709
  %v712 = vor.u32 %v710, %v711
  %v713 = vsub.s32 4294967266, %v708
  %v714 = vadd.s32 %v713, 127
  %v715 = vshll.u32 %v714, 23
  %v716 = vor.u32 4788187, %v715
  %v717 = vand.u32 2147483647, %v716
  %v719 = vcvt.s32.f32 %v712
  %v720 = vmul.f32 %v719, %v717
  %v721 = vxor.u32 %v720, 2147483648
  %v722 = vsel %vm639, %v721, %v720
  %v723 = vsub.s32 4, %v699
  %v724 = vsel %vm639, %v723, %v699
  %v725 = vsel %vm638, %v114, %v722
  %v726 = vsel %vm638, 0, %v724
  %v727 = vcosq.f32.pop %v725
  %v728 = vsinq.f32.pop %v725
  %vm729 = vweird.f32 %v114
  %v730 = vand.u32 %v726, 3
  %vm731 = vcmp.lt.s32.totalorder %v730, 2
  %vm732 = vcmp.eq.s32.totalorder %v730, 0
  %v733 = vxor.u32 %v728, 2147483648
  %v734 = vsel %vm732, %v727, %v733
  %vm735 = vcmp.eq.s32.totalorder %v730, 2
  %v736 = vxor.u32 %v727, 2147483648
  %v737 = vsel %vm735, %v736, %v728
  %v738 = vsel %vm731, %v734, %v737
  %v739 = vsel %vm729, nan, %v738
  %v740 = vand.u32 2147483647, %v115
  %vm741 = vcmp.le.f32.partialorder %v740, 0.7853982
  %vm742 = vcmp.lt.s32.totalorder %v115, 0
  %v743 = vand.u32 %v115, 2139095040
  %v744 = vshrl.u32 %v743, 23
  %v745 = vsub.s32 %v744, 127
  %v746 = vand.u32 2147483647, %v115
  %v747 = vand.u32 %v746, 8388607
  %v748 = vor.u32 %v747, 8388608
  %v749 = vsub.s32 0, %v748
  %v750 = vadd.s32 %v745, 1
  %vm751 = vcmp.gt.s32.totalorder %v750, 0
  %v752 = vsel %vm751, %v750, 0
  %v753 = vshrl.u32 %v752, 5
  %v754 = vand.u32 %v752, 31
  %v755 = vsub.s32 32, %v754
  %v756 = vshrl.u32 683565275, %v755
  %v757 = vshll.u32 683565275, %v754
  %v758 = vshrl.u32 2475754826, %v755
  %v759 = vor.u32 %v757, %v758
  %v760 = vshll.u32 2475754826, %v754
  %v761 = vshrl.u32 2131351028, %v755
  %v762 = vor.u32 %v760, %v761
  %v763 = vshll.u32 2131351028, %v754
  %v764 = vshrl.u32 2102212464, %v755
  %v765 = vor.u32 %v763, %v764
  %v766 = vshll.u32 2102212464, %v754
  %v767 = vshrl.u32 920167782, %v755
  %v768 = vor.u32 %v766, %v767
  %v769 = vshll.u32 920167782, %v754
  %v770 = vshrl.u32 1326507024, %v755
  %v771 = vor.u32 %v769, %v770
  %vm772 = vcmp.lt.s32.totalorder %v753, 1
  %vm773 = vcmp.lt.s32.totalorder %v753, 2
  %vm774 = vcmp.lt.s32.totalorder %v753, 3
  %vm775 = vcmp.lt.s32.totalorder %v753, 4
  %v776 = vsel %vm772, %v756, %v759
  %v777 = vsel %vm775, %v765, 2102212464
  %v778 = vsel %vm774, %v762, %v777
  %v779 = vsel %vm773, %v776, %v778
  %v780 = vsel %vm772, %v759, %v762
  %v781 = vsel %vm775, %v768, 920167782
  %v782 = vsel %vm774, %v765, %v781
  %v783 = vsel %vm773, %v780, %v782
  %v784 = vsel %vm772, %v762, %v765
  %v785 = vsel %vm775, %v771, 1326507024
  %v786 = vsel %vm774, %v768, %v785
  %v787 = vsel %vm773, %v784, %v786
  %v788 = vshll.u32 %v748, 8
  %v789 = vmul.u32.u64.compose %v788, %v787
  %v790 = vextract.low.u32 %v789
  %v791 = vextract.high.u32 %v789
  %v792 = vmul.u32.u64.compose %v788, %v783
  %v793 = vextract.low.u32 %v792
  %v794 = vextract.high.u32 %v792
  %v795 = vmul.u32 %v788, %v779
  %v796 = vadd.s32 %v791, %v793
  %vm797 = vc.u32 %v791, %v793
  %v798 = vadd.s32 %v794, 1
  %v799 = vsel %vm797, %v798, %v794
  %v800 = vadd.s32 %v795, %v799
  %v801 = vadd.s32 %v800, 536870912
  %v802 = vshrl.u32 %v801, 30
  %v803 = vshll.u32 %v802, 30
  %v804 = vsub.s32 %v800, %v803
  %vm805 = vcmp.lt.s32.totalorder %v804, 0
  %v806 = vsub.s32 0, %v804
  %v807 = vsel %vm805, %v806, %v804
  %v808 = vclz %v807
  %v809 = vsub.s32 %v808, 2
  %vm810 = vcmp.gt.s32.totalorder 0, %v809
  %v811 = vsel %vm810, 0, %v809
  %v812 = vsub.s32 32, %v811
  %v813 = vshll.u32 %v804, %v811
  %v814 = vshrl.u32 %v796, %v812
  %v815 = vor.u32 %v813, %v814
  %v816 = vsub.s32 4294967266, %v811
  %v817 = vadd.s32 %v816, 127
  %v818 = vshll.u32 %v817, 23
  %v819 = vor.u32 4788187, %v818
  %v820 = vand.u32 2147483647, %v819
  %v822 = vcvt.s32.f32 %v815
  %v823 = vmul.f32 %v822, %v820
  %v824 = vxor.u32 %v823, 2147483648
  %v825 = vsel %vm742, %v824, %v823
  %v826 = vsub.s32 4, %v802
  %v827 = vsel %vm742, %v826, %v802
  %v828 = vsel %vm741, %v115, %v825
  %v829 = vsel %vm741, 0, %v827
  %v830 = vcosq.f32.pop %v828
  %v831 = vsinq.f32.pop %v828
  %vm832 = vweird.f32 %v115
  %v833 = vand.u32 %v829, 3
  %vm834 = vcmp.lt.s32.totalorder %v833, 2
  %vm835 = vcmp.eq.s32.totalorder %v833, 0
  %v836 = vxor.u32 %v831, 2147483648
  %v837 = vsel %vm835, %v830, %v836
  %vm838 = vcmp.eq.s32.totalorder %v833, 2
  %v839 = vxor.u32 %v830, 2147483648
  %v840 = vsel %vm838, %v839, %v831
  %v841 = vsel %vm834, %v837, %v840
  %v842 = vsel %vm832, nan, %v841
  %v843 = vand.u32 2147483647, %v116
  %vm844 = vcmp.le.f32.partialorder %v843, 0.7853982
  %vm845 = vcmp.lt.s32.totalorder %v116, 0
  %v846 = vand.u32 %v116, 2139095040
  %v847 = vshrl.u32 %v846, 23
  %v848 = vsub.s32 %v847, 127
  %v849 = vand.u32 2147483647, %v116
  %v850 = vand.u32 %v849, 8388607
  %v851 = vor.u32 %v850, 8388608
  %v852 = vsub.s32 0, %v851
  %v853 = vadd.s32 %v848, 1
  %vm854 = vcmp.gt.s32.totalorder %v853, 0
  %v855 = vsel %vm854, %v853, 0
  %v856 = vshrl.u32 %v855, 5
  %v857 = vand.u32 %v855, 31
  %v858 = vsub.s32 32, %v857
  %v859 = vshrl.u32 683565275, %v858
  %v860 = vshll.u32 683565275, %v857
  %v861 = vshrl.u32 2475754826, %v858
  %v862 = vor.u32 %v860, %v861
  %v863 = vshll.u32 2475754826, %v857
  %v864 = vshrl.u32 2131351028, %v858
  %v865 = vor.u32 %v863, %v864
  %v866 = vshll.u32 2131351028, %v857
  %v867 = vshrl.u32 2102212464, %v858
  %v868 = vor.u32 %v866, %v867
  %v869 = vshll.u32 2102212464, %v857
  %v870 = vshrl.u32 920167782, %v858
  %v871 = vor.u32 %v869, %v870
  %v872 = vshll.u32 920167782, %v857
  %v873 = vshrl.u32 1326507024, %v858
  %v874 = vor.u32 %v872, %v873
  %vm875 = vcmp.lt.s32.totalorder %v856, 1
  %vm876 = vcmp.lt.s32.totalorder %v856, 2
  %vm877 = vcmp.lt.s32.totalorder %v856, 3
  %vm878 = vcmp.lt.s32.totalorder %v856, 4
  %v879 = vsel %vm875, %v859, %v862
  %v880 = vsel %vm878, %v868, 2102212464
  %v881 = vsel %vm877, %v865, %v880
  %v882 = vsel %vm876, %v879, %v881
  %v883 = vsel %vm875, %v862, %v865
  %v884 = vsel %vm878, %v871, 920167782
  %v885 = vsel %vm877, %v868, %v884
  %v886 = vsel %vm876, %v883, %v885
  %v887 = vsel %vm875, %v865, %v868
  %v888 = vsel %vm878, %v874, 1326507024
  %v889 = vsel %vm877, %v871, %v888
  %v890 = vsel %vm876, %v887, %v889
  %v891 = vshll.u32 %v851, 8
  %v892 = vmul.u32.u64.compose %v891, %v890
  %v893 = vextract.low.u32 %v892
  %v894 = vextract.high.u32 %v892
  %v895 = vmul.u32.u64.compose %v891, %v886
  %v896 = vextract.low.u32 %v895
  %v897 = vextract.high.u32 %v895
  %v898 = vmul.u32 %v891, %v882
  %v899 = vadd.s32 %v894, %v896
  %vm900 = vc.u32 %v894, %v896
  %v901 = vadd.s32 %v897, 1
  %v902 = vsel %vm900, %v901, %v897
  %v903 = vadd.s32 %v898, %v902
  %v904 = vadd.s32 %v903, 536870912
  %v905 = vshrl.u32 %v904, 30
  %v906 = vshll.u32 %v905, 30
  %v907 = vsub.s32 %v903, %v906
  %vm908 = vcmp.lt.s32.totalorder %v907, 0
  %v909 = vsub.s32 0, %v907
  %v910 = vsel %vm908, %v909, %v907
  %v911 = vclz %v910
  %v912 = vsub.s32 %v911, 2
  %vm913 = vcmp.gt.s32.totalorder 0, %v912
  %v914 = vsel %vm913, 0, %v912
  %v915 = vsub.s32 32, %v914
  %v916 = vshll.u32 %v907, %v914
  %v917 = vshrl.u32 %v899, %v915
  %v918 = vor.u32 %v916, %v917
  %v919 = vsub.s32 4294967266, %v914
  %v920 = vadd.s32 %v919, 127
  %v921 = vshll.u32 %v920, 23
  %v922 = vor.u32 4788187, %v921
  %v923 = vand.u32 2147483647, %v922
  %v925 = vcvt.s32.f32 %v918
  %v926 = vmul.f32 %v925, %v923
  %v927 = vxor.u32 %v926, 2147483648
  %v928 = vsel %vm845, %v927, %v926
  %v929 = vsub.s32 4, %v905
  %v930 = vsel %vm845, %v929, %v905
  %v931 = vsel %vm844, %v116, %v928
  %v932 = vsel %vm844, 0, %v930
  %v933 = vcosq.f32.pop %v931
  %v934 = vsinq.f32.pop %v931
  %vm935 = vweird.f32 %v116
  %v936 = vand.u32 %v932, 3
  %vm937 = vcmp.lt.s32.totalorder %v936, 2
  %vm938 = vcmp.eq.s32.totalorder %v936, 0
  %v939 = vxor.u32 %v934, 2147483648
  %v940 = vsel %vm938, %v933, %v939
  %vm941 = vcmp.eq.s32.totalorder %v936, 2
  %v942 = vxor.u32 %v933, 2147483648
  %v943 = vsel %vm941, %v942, %v934
  %v944 = vsel %vm937, %v940, %v943
  %v945 = vsel %vm935, nan, %v944
  %v946 = vand.u32 2147483647, %v117
  %vm947 = vcmp.le.f32.partialorder %v946, 0.7853982
  %vm948 = vcmp.lt.s32.totalorder %v117, 0
  %v949 = vand.u32 %v117, 2139095040
  %v950 = vshrl.u32 %v949, 23
  %v951 = vsub.s32 %v950, 127
  %v952 = vand.u32 2147483647, %v117
  %v953 = vand.u32 %v952, 8388607
  %v954 = vor.u32 %v953, 8388608
  %v955 = vsub.s32 0, %v954
  %v956 = vadd.s32 %v951, 1
  %vm957 = vcmp.gt.s32.totalorder %v956, 0
  %v958 = vsel %vm957, %v956, 0
  %v959 = vshrl.u32 %v958, 5
  %v960 = vand.u32 %v958, 31
  %v961 = vsub.s32 32, %v960
  %v962 = vshrl.u32 683565275, %v961
  %v963 = vshll.u32 683565275, %v960
  %v964 = vshrl.u32 2475754826, %v961
  %v965 = vor.u32 %v963, %v964
  %v966 = vshll.u32 2475754826, %v960
  %v967 = vshrl.u32 2131351028, %v961
  %v968 = vor.u32 %v966, %v967
  %v969 = vshll.u32 2131351028, %v960
  %v970 = vshrl.u32 2102212464, %v961
  %v971 = vor.u32 %v969, %v970
  %v972 = vshll.u32 2102212464, %v960
  %v973 = vshrl.u32 920167782, %v961
  %v974 = vor.u32 %v972, %v973
  %v975 = vshll.u32 920167782, %v960
  %v976 = vshrl.u32 1326507024, %v961
  %v977 = vor.u32 %v975, %v976
  %vm978 = vcmp.lt.s32.totalorder %v959, 1
  %vm979 = vcmp.lt.s32.totalorder %v959, 2
  %vm980 = vcmp.lt.s32.totalorder %v959, 3
  %vm981 = vcmp.lt.s32.totalorder %v959, 4
  %v982 = vsel %vm978, %v962, %v965
  %v983 = vsel %vm981, %v971, 2102212464
  %v984 = vsel %vm980, %v968, %v983
  %v985 = vsel %vm979, %v982, %v984
  %v986 = vsel %vm978, %v965, %v968
  %v987 = vsel %vm981, %v974, 920167782
  %v988 = vsel %vm980, %v971, %v987
  %v989 = vsel %vm979, %v986, %v988
  %v990 = vsel %vm978, %v968, %v971
  %v991 = vsel %vm981, %v977, 1326507024
  %v992 = vsel %vm980, %v974, %v991
  %v993 = vsel %vm979, %v990, %v992
  %v994 = vshll.u32 %v954, 8
  %v995 = vmul.u32.u64.compose %v994, %v993
  %v996 = vextract.low.u32 %v995
  %v997 = vextract.high.u32 %v995
  %v998 = vmul.u32.u64.compose %v994, %v989
  %v999 = vextract.low.u32 %v998
  %v1000 = vextract.high.u32 %v998
  %v1001 = vmul.u32 %v994, %v985
  %v1002 = vadd.s32 %v997, %v999
  %vm1003 = vc.u32 %v997, %v999
  %v1004 = vadd.s32 %v1000, 1
  %v1005 = vsel %vm1003, %v1004, %v1000
  %v1006 = vadd.s32 %v1001, %v1005
  %v1007 = vadd.s32 %v1006, 536870912
  %v1008 = vshrl.u32 %v1007, 30
  %v1009 = vshll.u32 %v1008, 30
  %v1010 = vsub.s32 %v1006, %v1009
  %vm1011 = vcmp.lt.s32.totalorder %v1010, 0
  %v1012 = vsub.s32 0, %v1010
  %v1013 = vsel %vm1011, %v1012, %v1010
  %v1014 = vclz %v1013
  %v1015 = vsub.s32 %v1014, 2
  %vm1016 = vcmp.gt.s32.totalorder 0, %v1015
  %v1017 = vsel %vm1016, 0, %v1015
  %v1018 = vsub.s32 32, %v1017
  %v1019 = vshll.u32 %v1010, %v1017
  %v1020 = vshrl.u32 %v1002, %v1018
  %v1021 = vor.u32 %v1019, %v1020
  %v1022 = vsub.s32 4294967266, %v1017
  %v1023 = vadd.s32 %v1022, 127
  %v1024 = vshll.u32 %v1023, 23
  %v1025 = vor.u32 4788187, %v1024
  %v1026 = vand.u32 2147483647, %v1025
  %v1028 = vcvt.s32.f32 %v1021
  %v1029 = vmul.f32 %v1028, %v1026
  %v1030 = vxor.u32 %v1029, 2147483648
  %v1031 = vsel %vm948, %v1030, %v1029
  %v1032 = vsub.s32 4, %v1008
  %v1033 = vsel %vm948, %v1032, %v1008
  %v1034 = vsel %vm947, %v117, %v1031
  %v1035 = vsel %vm947, 0, %v1033
  %v1036 = vcosq.f32.pop %v1034
  %v1037 = vsinq.f32.pop %v1034
  %vm1038 = vweird.f32 %v117
  %v1039 = vand.u32 %v1035, 3
  %vm1040 = vcmp.lt.s32.totalorder %v1039, 2
  %vm1041 = vcmp.eq.s32.totalorder %v1039, 0
  %v1042 = vxor.u32 %v1037, 2147483648
  %v1043 = vsel %vm1041, %v1036, %v1042
  %vm1044 = vcmp.eq.s32.totalorder %v1039, 2
  %v1045 = vxor.u32 %v1036, 2147483648
  %v1046 = vsel %vm1044, %v1045, %v1037
  %v1047 = vsel %vm1040, %v1043, %v1046
  %v1048 = vsel %vm1038, nan, %v1047
  %v1049 = vand.u32 2147483647, %v118
  %vm1050 = vcmp.le.f32.partialorder %v1049, 0.7853982
  %vm1051 = vcmp.lt.s32.totalorder %v118, 0
  %v1052 = vand.u32 %v118, 2139095040
  %v1053 = vshrl.u32 %v1052, 23
  %v1054 = vsub.s32 %v1053, 127
  %v1055 = vand.u32 2147483647, %v118
  %v1056 = vand.u32 %v1055, 8388607
  %v1057 = vor.u32 %v1056, 8388608
  %v1058 = vsub.s32 0, %v1057
  %v1059 = vadd.s32 %v1054, 1
  %vm1060 = vcmp.gt.s32.totalorder %v1059, 0
  %v1061 = vsel %vm1060, %v1059, 0
  %v1062 = vshrl.u32 %v1061, 5
  %v1063 = vand.u32 %v1061, 31
  %v1064 = vsub.s32 32, %v1063
  %v1065 = vshrl.u32 683565275, %v1064
  %v1066 = vshll.u32 683565275, %v1063
  %v1067 = vshrl.u32 2475754826, %v1064
  %v1068 = vor.u32 %v1066, %v1067
  %v1069 = vshll.u32 2475754826, %v1063
  %v1070 = vshrl.u32 2131351028, %v1064
  %v1071 = vor.u32 %v1069, %v1070
  %v1072 = vshll.u32 2131351028, %v1063
  %v1073 = vshrl.u32 2102212464, %v1064
  %v1074 = vor.u32 %v1072, %v1073
  %v1075 = vshll.u32 2102212464, %v1063
  %v1076 = vshrl.u32 920167782, %v1064
  %v1077 = vor.u32 %v1075, %v1076
  %v1078 = vshll.u32 920167782, %v1063
  %v1079 = vshrl.u32 1326507024, %v1064
  %v1080 = vor.u32 %v1078, %v1079
  %vm1081 = vcmp.lt.s32.totalorder %v1062, 1
  %vm1082 = vcmp.lt.s32.totalorder %v1062, 2
  %vm1083 = vcmp.lt.s32.totalorder %v1062, 3
  %vm1084 = vcmp.lt.s32.totalorder %v1062, 4
  %v1085 = vsel %vm1081, %v1065, %v1068
  %v1086 = vsel %vm1084, %v1074, 2102212464
  %v1087 = vsel %vm1083, %v1071, %v1086
  %v1088 = vsel %vm1082, %v1085, %v1087
  %v1089 = vsel %vm1081, %v1068, %v1071
  %v1090 = vsel %vm1084, %v1077, 920167782
  %v1091 = vsel %vm1083, %v1074, %v1090
  %v1092 = vsel %vm1082, %v1089, %v1091
  %v1093 = vsel %vm1081, %v1071, %v1074
  %v1094 = vsel %vm1084, %v1080, 1326507024
  %v1095 = vsel %vm1083, %v1077, %v1094
  %v1096 = vsel %vm1082, %v1093, %v1095
  %v1097 = vshll.u32 %v1057, 8
  %v1098 = vmul.u32.u64.compose %v1097, %v1096
  %v1099 = vextract.low.u32 %v1098
  %v1100 = vextract.high.u32 %v1098
  %v1101 = vmul.u32.u64.compose %v1097, %v1092
  %v1102 = vextract.low.u32 %v1101
  %v1103 = vextract.high.u32 %v1101
  %v1104 = vmul.u32 %v1097, %v1088
  %v1105 = vadd.s32 %v1100, %v1102
  %vm1106 = vc.u32 %v1100, %v1102
  %v1107 = vadd.s32 %v1103, 1
  %v1108 = vsel %vm1106, %v1107, %v1103
  %v1109 = vadd.s32 %v1104, %v1108
  %v1110 = vadd.s32 %v1109, 536870912
  %v1111 = vshrl.u32 %v1110, 30
  %v1112 = vshll.u32 %v1111, 30
  %v1113 = vsub.s32 %v1109, %v1112
  %vm1114 = vcmp.lt.s32.totalorder %v1113, 0
  %v1115 = vsub.s32 0, %v1113
  %v1116 = vsel %vm1114, %v1115, %v1113
  %v1117 = vclz %v1116
  %v1118 = vsub.s32 %v1117, 2
  %vm1119 = vcmp.gt.s32.totalorder 0, %v1118
  %v1120 = vsel %vm1119, 0, %v1118
  %v1121 = vsub.s32 32, %v1120
  %v1122 = vshll.u32 %v1113, %v1120
  %v1123 = vshrl.u32 %v1105, %v1121
  %v1124 = vor.u32 %v1122, %v1123
  %v1125 = vsub.s32 4294967266, %v1120
  %v1126 = vadd.s32 %v1125, 127
  %v1127 = vshll.u32 %v1126, 23
  %v1128 = vor.u32 4788187, %v1127
  %v1129 = vand.u32 2147483647, %v1128
  %v1131 = vcvt.s32.f32 %v1124
  %v1132 = vmul.f32 %v1131, %v1129
  %v1133 = vxor.u32 %v1132, 2147483648
  %v1134 = vsel %vm1051, %v1133, %v1132
  %v1135 = vsub.s32 4, %v1111
  %v1136 = vsel %vm1051, %v1135, %v1111
  %v1137 = vsel %vm1050, %v118, %v1134
  %v1138 = vsel %vm1050, 0, %v1136
  %v1139 = vcosq.f32.pop %v1137
  %v1140 = vsinq.f32.pop %v1137
  %vm1141 = vweird.f32 %v118
  %v1142 = vand.u32 %v1138, 3
  %vm1143 = vcmp.lt.s32.totalorder %v1142, 2
  %vm1144 = vcmp.eq.s32.totalorder %v1142, 0
  %v1145 = vxor.u32 %v1140, 2147483648
  %v1146 = vsel %vm1144, %v1139, %v1145
  %vm1147 = vcmp.eq.s32.totalorder %v1142, 2
  %v1148 = vxor.u32 %v1139, 2147483648
  %v1149 = vsel %vm1147, %v1148, %v1140
  %v1150 = vsel %vm1143, %v1146, %v1149
  %v1151 = vsel %vm1141, nan, %v1150
  %v1152 = vand.u32 2147483647, %v119
  %vm1153 = vcmp.le.f32.partialorder %v1152, 0.7853982
  %vm1154 = vcmp.lt.s32.totalorder %v119, 0
  %v1155 = vand.u32 %v119, 2139095040
  %v1156 = vshrl.u32 %v1155, 23
  %v1157 = vsub.s32 %v1156, 127
  %v1158 = vand.u32 2147483647, %v119
  %v1159 = vand.u32 %v1158, 8388607
  %v1160 = vor.u32 %v1159, 8388608
  %v1161 = vsub.s32 0, %v1160
  %v1162 = vadd.s32 %v1157, 1
  %vm1163 = vcmp.gt.s32.totalorder %v1162, 0
  %v1164 = vsel %vm1163, %v1162, 0
  %v1165 = vshrl.u32 %v1164, 5
  %v1166 = vand.u32 %v1164, 31
  %v1167 = vsub.s32 32, %v1166
  %v1168 = vshrl.u32 683565275, %v1167
  %v1169 = vshll.u32 683565275, %v1166
  %v1170 = vshrl.u32 2475754826, %v1167
  %v1171 = vor.u32 %v1169, %v1170
  %v1172 = vshll.u32 2475754826, %v1166
  %v1173 = vshrl.u32 2131351028, %v1167
  %v1174 = vor.u32 %v1172, %v1173
  %v1175 = vshll.u32 2131351028, %v1166
  %v1176 = vshrl.u32 2102212464, %v1167
  %v1177 = vor.u32 %v1175, %v1176
  %v1178 = vshll.u32 2102212464, %v1166
  %v1179 = vshrl.u32 920167782, %v1167
  %v1180 = vor.u32 %v1178, %v1179
  %v1181 = vshll.u32 920167782, %v1166
  %v1182 = vshrl.u32 1326507024, %v1167
  %v1183 = vor.u32 %v1181, %v1182
  %vm1184 = vcmp.lt.s32.totalorder %v1165, 1
  %vm1185 = vcmp.lt.s32.totalorder %v1165, 2
  %vm1186 = vcmp.lt.s32.totalorder %v1165, 3
  %vm1187 = vcmp.lt.s32.totalorder %v1165, 4
  %v1188 = vsel %vm1184, %v1168, %v1171
  %v1189 = vsel %vm1187, %v1177, 2102212464
  %v1190 = vsel %vm1186, %v1174, %v1189
  %v1191 = vsel %vm1185, %v1188, %v1190
  %v1192 = vsel %vm1184, %v1171, %v1174
  %v1193 = vsel %vm1187, %v1180, 920167782
  %v1194 = vsel %vm1186, %v1177, %v1193
  %v1195 = vsel %vm1185, %v1192, %v1194
  %v1196 = vsel %vm1184, %v1174, %v1177
  %v1197 = vsel %vm1187, %v1183, 1326507024
  %v1198 = vsel %vm1186, %v1180, %v1197
  %v1199 = vsel %vm1185, %v1196, %v1198
  %v1200 = vshll.u32 %v1160, 8
  %v1201 = vmul.u32.u64.compose %v1200, %v1199
  %v1202 = vextract.low.u32 %v1201
  %v1203 = vextract.high.u32 %v1201
  %v1204 = vmul.u32.u64.compose %v1200, %v1195
  %v1205 = vextract.low.u32 %v1204
  %v1206 = vextract.high.u32 %v1204
  %v1207 = vmul.u32 %v1200, %v1191
  %v1208 = vadd.s32 %v1203, %v1205
  %vm1209 = vc.u32 %v1203, %v1205
  %v1210 = vadd.s32 %v1206, 1
  %v1211 = vsel %vm1209, %v1210, %v1206
  %v1212 = vadd.s32 %v1207, %v1211
  %v1213 = vadd.s32 %v1212, 536870912
  %v1214 = vshrl.u32 %v1213, 30
  %v1215 = vshll.u32 %v1214, 30
  %v1216 = vsub.s32 %v1212, %v1215
  %vm1217 = vcmp.lt.s32.totalorder %v1216, 0
  %v1218 = vsub.s32 0, %v1216
  %v1219 = vsel %vm1217, %v1218, %v1216
  %v1220 = vclz %v1219
  %v1221 = vsub.s32 %v1220, 2
  %vm1222 = vcmp.gt.s32.totalorder 0, %v1221
  %v1223 = vsel %vm1222, 0, %v1221
  %v1224 = vsub.s32 32, %v1223
  %v1225 = vshll.u32 %v1216, %v1223
  %v1226 = vshrl.u32 %v1208, %v1224
  %v1227 = vor.u32 %v1225, %v1226
  %v1228 = vsub.s32 4294967266, %v1223
  %v1229 = vadd.s32 %v1228, 127
  %v1230 = vshll.u32 %v1229, 23
  %v1231 = vor.u32 4788187, %v1230
  %v1232 = vand.u32 2147483647, %v1231
  %v1234 = vcvt.s32.f32 %v1227
  %v1235 = vmul.f32 %v1234, %v1232
  %v1236 = vxor.u32 %v1235, 2147483648
  %v1237 = vsel %vm1154, %v1236, %v1235
  %v1238 = vsub.s32 4, %v1214
  %v1239 = vsel %vm1154, %v1238, %v1214
  %v1240 = vsel %vm1153, %v119, %v1237
  %v1241 = vsel %vm1153, 0, %v1239
  %v1242 = vcosq.f32.pop %v1240
  %v1243 = vsinq.f32.pop %v1240
  %vm1244 = vweird.f32 %v119
  %v1245 = vand.u32 %v1241, 3
  %vm1246 = vcmp.lt.s32.totalorder %v1245, 2
  %vm1247 = vcmp.eq.s32.totalorder %v1245, 0
  %v1248 = vxor.u32 %v1243, 2147483648
  %v1249 = vsel %vm1247, %v1242, %v1248
  %vm1250 = vcmp.eq.s32.totalorder %v1245, 2
  %v1251 = vxor.u32 %v1242, 2147483648
  %v1252 = vsel %vm1250, %v1251, %v1243
  %v1253 = vsel %vm1246, %v1249, %v1252
  %v1254 = vsel %vm1244, nan, %v1253
  %v1255 = vand.u32 2147483647, %v120
  %vm1256 = vcmp.le.f32.partialorder %v1255, 0.7853982
  %vm1257 = vcmp.lt.s32.totalorder %v120, 0
  %v1258 = vand.u32 %v120, 2139095040
  %v1259 = vshrl.u32 %v1258, 23
  %v1260 = vsub.s32 %v1259, 127
  %v1261 = vand.u32 2147483647, %v120
  %v1262 = vand.u32 %v1261, 8388607
  %v1263 = vor.u32 %v1262, 8388608
  %v1264 = vsub.s32 0, %v1263
  %v1265 = vadd.s32 %v1260, 1
  %vm1266 = vcmp.gt.s32.totalorder %v1265, 0
  %v1267 = vsel %vm1266, %v1265, 0
  %v1268 = vshrl.u32 %v1267, 5
  %v1269 = vand.u32 %v1267, 31
  %v1270 = vsub.s32 32, %v1269
  %v1271 = vshrl.u32 683565275, %v1270
  %v1272 = vshll.u32 683565275, %v1269
  %v1273 = vshrl.u32 2475754826, %v1270
  %v1274 = vor.u32 %v1272, %v1273
  %v1275 = vshll.u32 2475754826, %v1269
  %v1276 = vshrl.u32 2131351028, %v1270
  %v1277 = vor.u32 %v1275, %v1276
  %v1278 = vshll.u32 2131351028, %v1269
  %v1279 = vshrl.u32 2102212464, %v1270
  %v1280 = vor.u32 %v1278, %v1279
  %v1281 = vshll.u32 2102212464, %v1269
  %v1282 = vshrl.u32 920167782, %v1270
  %v1283 = vor.u32 %v1281, %v1282
  %v1284 = vshll.u32 920167782, %v1269
  %v1285 = vshrl.u32 1326507024, %v1270
  %v1286 = vor.u32 %v1284, %v1285
  %vm1287 = vcmp.lt.s32.totalorder %v1268, 1
  %vm1288 = vcmp.lt.s32.totalorder %v1268, 2
  %vm1289 = vcmp.lt.s32.totalorder %v1268, 3
  %vm1290 = vcmp.lt.s32.totalorder %v1268, 4
  %v1291 = vsel %vm1287, %v1271, %v1274
  %v1292 = vsel %vm1290, %v1280, 2102212464
  %v1293 = vsel %vm1289, %v1277, %v1292
  %v1294 = vsel %vm1288, %v1291, %v1293
  %v1295 = vsel %vm1287, %v1274, %v1277
  %v1296 = vsel %vm1290, %v1283, 920167782
  %v1297 = vsel %vm1289, %v1280, %v1296
  %v1298 = vsel %vm1288, %v1295, %v1297
  %v1299 = vsel %vm1287, %v1277, %v1280
  %v1300 = vsel %vm1290, %v1286, 1326507024
  %v1301 = vsel %vm1289, %v1283, %v1300
  %v1302 = vsel %vm1288, %v1299, %v1301
  %v1303 = vshll.u32 %v1263, 8
  %v1304 = vmul.u32.u64.compose %v1303, %v1302
  %v1305 = vextract.low.u32 %v1304
  %v1306 = vextract.high.u32 %v1304
  %v1307 = vmul.u32.u64.compose %v1303, %v1298
  %v1308 = vextract.low.u32 %v1307
  %v1309 = vextract.high.u32 %v1307
  %v1310 = vmul.u32 %v1303, %v1294
  %v1311 = vadd.s32 %v1306, %v1308
  %vm1312 = vc.u32 %v1306, %v1308
  %v1313 = vadd.s32 %v1309, 1
  %v1314 = vsel %vm1312, %v1313, %v1309
  %v1315 = vadd.s32 %v1310, %v1314
  %v1316 = vadd.s32 %v1315, 536870912
  %v1317 = vshrl.u32 %v1316, 30
  %v1318 = vshll.u32 %v1317, 30
  %v1319 = vsub.s32 %v1315, %v1318
  %vm1320 = vcmp.lt.s32.totalorder %v1319, 0
  %v1321 = vsub.s32 0, %v1319
  %v1322 = vsel %vm1320, %v1321, %v1319
  %v1323 = vclz %v1322
  %v1324 = vsub.s32 %v1323, 2
  %vm1325 = vcmp.gt.s32.totalorder 0, %v1324
  %v1326 = vsel %vm1325, 0, %v1324
  %v1327 = vsub.s32 32, %v1326
  %v1328 = vshll.u32 %v1319, %v1326
  %v1329 = vshrl.u32 %v1311, %v1327
  %v1330 = vor.u32 %v1328, %v1329
  %v1331 = vsub.s32 4294967266, %v1326
  %v1332 = vadd.s32 %v1331, 127
  %v1333 = vshll.u32 %v1332, 23
  %v1334 = vor.u32 4788187, %v1333
  %v1335 = vand.u32 2147483647, %v1334
  %v1337 = vcvt.s32.f32 %v1330
  %v1338 = vmul.f32 %v1337, %v1335
  %v1339 = vxor.u32 %v1338, 2147483648
  %v1340 = vsel %vm1257, %v1339, %v1338
  %v1341 = vsub.s32 4, %v1317
  %v1342 = vsel %vm1257, %v1341, %v1317
  %v1343 = vsel %vm1256, %v120, %v1340
  %v1344 = vsel %vm1256, 0, %v1342
  %v1345 = vcosq.f32.pop %v1343
  %v1346 = vsinq.f32.pop %v1343
  %vm1347 = vweird.f32 %v120
  %v1348 = vand.u32 %v1344, 3
  %vm1349 = vcmp.lt.s32.totalorder %v1348, 2
  %vm1350 = vcmp.eq.s32.totalorder %v1348, 0
  %v1351 = vxor.u32 %v1346, 2147483648
  %v1352 = vsel %vm1350, %v1345, %v1351
  %vm1353 = vcmp.eq.s32.totalorder %v1348, 2
  %v1354 = vxor.u32 %v1345, 2147483648
  %v1355 = vsel %vm1353, %v1354, %v1346
  %v1356 = vsel %vm1349, %v1352, %v1355
  %v1357 = vsel %vm1347, nan, %v1356
  %v1358 = vand.u32 2147483647, %v121
  %vm1359 = vcmp.le.f32.partialorder %v1358, 0.7853982
  %vm1360 = vcmp.lt.s32.totalorder %v121, 0
  %v1361 = vand.u32 %v121, 2139095040
  %v1362 = vshrl.u32 %v1361, 23
  %v1363 = vsub.s32 %v1362, 127
  %v1364 = vand.u32 2147483647, %v121
  %v1365 = vand.u32 %v1364, 8388607
  %v1366 = vor.u32 %v1365, 8388608
  %v1367 = vsub.s32 0, %v1366
  %v1368 = vadd.s32 %v1363, 1
  %vm1369 = vcmp.gt.s32.totalorder %v1368, 0
  %v1370 = vsel %vm1369, %v1368, 0
  %v1371 = vshrl.u32 %v1370, 5
  %v1372 = vand.u32 %v1370, 31
  %v1373 = vsub.s32 32, %v1372
  %v1374 = vshrl.u32 683565275, %v1373
  %v1375 = vshll.u32 683565275, %v1372
  %v1376 = vshrl.u32 2475754826, %v1373
  %v1377 = vor.u32 %v1375, %v1376
  %v1378 = vshll.u32 2475754826, %v1372
  %v1379 = vshrl.u32 2131351028, %v1373
  %v1380 = vor.u32 %v1378, %v1379
  %v1381 = vshll.u32 2131351028, %v1372
  %v1382 = vshrl.u32 2102212464, %v1373
  %v1383 = vor.u32 %v1381, %v1382
  %v1384 = vshll.u32 2102212464, %v1372
  %v1385 = vshrl.u32 920167782, %v1373
  %v1386 = vor.u32 %v1384, %v1385
  %v1387 = vshll.u32 920167782, %v1372
  %v1388 = vshrl.u32 1326507024, %v1373
  %v1389 = vor.u32 %v1387, %v1388
  %vm1390 = vcmp.lt.s32.totalorder %v1371, 1
  %vm1391 = vcmp.lt.s32.totalorder %v1371, 2
  %vm1392 = vcmp.lt.s32.totalorder %v1371, 3
  %vm1393 = vcmp.lt.s32.totalorder %v1371, 4
  %v1394 = vsel %vm1390, %v1374, %v1377
  %v1395 = vsel %vm1393, %v1383, 2102212464
  %v1396 = vsel %vm1392, %v1380, %v1395
  %v1397 = vsel %vm1391, %v1394, %v1396
  %v1398 = vsel %vm1390, %v1377, %v1380
  %v1399 = vsel %vm1393, %v1386, 920167782
  %v1400 = vsel %vm1392, %v1383, %v1399
  %v1401 = vsel %vm1391, %v1398, %v1400
  %v1402 = vsel %vm1390, %v1380, %v1383
  %v1403 = vsel %vm1393, %v1389, 1326507024
  %v1404 = vsel %vm1392, %v1386, %v1403
  %v1405 = vsel %vm1391, %v1402, %v1404
  %v1406 = vshll.u32 %v1366, 8
  %v1407 = vmul.u32.u64.compose %v1406, %v1405
  %v1408 = vextract.low.u32 %v1407
  %v1409 = vextract.high.u32 %v1407
  %v1410 = vmul.u32.u64.compose %v1406, %v1401
  %v1411 = vextract.low.u32 %v1410
  %v1412 = vextract.high.u32 %v1410
  %v1413 = vmul.u32 %v1406, %v1397
  %v1414 = vadd.s32 %v1409, %v1411
  %vm1415 = vc.u32 %v1409, %v1411
  %v1416 = vadd.s32 %v1412, 1
  %v1417 = vsel %vm1415, %v1416, %v1412
  %v1418 = vadd.s32 %v1413, %v1417
  %v1419 = vadd.s32 %v1418, 536870912
  %v1420 = vshrl.u32 %v1419, 30
  %v1421 = vshll.u32 %v1420, 30
  %v1422 = vsub.s32 %v1418, %v1421
  %vm1423 = vcmp.lt.s32.totalorder %v1422, 0
  %v1424 = vsub.s32 0, %v1422
  %v1425 = vsel %vm1423, %v1424, %v1422
  %v1426 = vclz %v1425
  %v1427 = vsub.s32 %v1426, 2
  %vm1428 = vcmp.gt.s32.totalorder 0, %v1427
  %v1429 = vsel %vm1428, 0, %v1427
  %v1430 = vsub.s32 32, %v1429
  %v1431 = vshll.u32 %v1422, %v1429
  %v1432 = vshrl.u32 %v1414, %v1430
  %v1433 = vor.u32 %v1431, %v1432
  %v1434 = vsub.s32 4294967266, %v1429
  %v1435 = vadd.s32 %v1434, 127
  %v1436 = vshll.u32 %v1435, 23
  %v1437 = vor.u32 4788187, %v1436
  %v1438 = vand.u32 2147483647, %v1437
  %v1440 = vcvt.s32.f32 %v1433
  %v1441 = vmul.f32 %v1440, %v1438
  %v1442 = vxor.u32 %v1441, 2147483648
  %v1443 = vsel %vm1360, %v1442, %v1441
  %v1444 = vsub.s32 4, %v1420
  %v1445 = vsel %vm1360, %v1444, %v1420
  %v1446 = vsel %vm1359, %v121, %v1443
  %v1447 = vsel %vm1359, 0, %v1445
  %v1448 = vcosq.f32.pop %v1446
  %v1449 = vsinq.f32.pop %v1446
  %vm1450 = vweird.f32 %v121
  %v1451 = vand.u32 %v1447, 3
  %vm1452 = vcmp.lt.s32.totalorder %v1451, 2
  %vm1453 = vcmp.eq.s32.totalorder %v1451, 0
  %v1454 = vxor.u32 %v1449, 2147483648
  %v1455 = vsel %vm1453, %v1448, %v1454
  %vm1456 = vcmp.eq.s32.totalorder %v1451, 2
  %v1457 = vxor.u32 %v1448, 2147483648
  %v1458 = vsel %vm1456, %v1457, %v1449
  %v1459 = vsel %vm1452, %v1455, %v1458
  %v1460 = vsel %vm1450, nan, %v1459
  %v1461 = vld [vmem:[%s0] sm:$0xff]
  %v1462 = vld [vmem:[%s0 + $0x8] sm:$0xff]
  %v1463 = vld [vmem:[%s0 + $0x10] sm:$0xff]
  %v1464 = vld [vmem:[%s0 + $0x18] sm:$0xff]
  %v1465 = vld [vmem:[%s0 + $0x20] sm:$0xff]
  %v1466 = vld [vmem:[%s0 + $0x28] sm:$0xff]
  %v1467 = vld [vmem:[%s0 + $0x30] sm:$0xff]
  %v1468 = vld [vmem:[%s0 + $0x38] sm:$0xff]
  %v1469 = vld [vmem:[%s0 + $0x40] sm:$0xff]
  %v1470 = vld [vmem:[%s0 + $0x48] sm:$0xff]
  %v1471 = vld [vmem:[%s0 + $0x50] sm:$0xff]
  %v1472 = vld [vmem:[%s0 + $0x58] sm:$0xff]
  %v1473 = vld [vmem:[%s0 + $0x60] sm:$0xff]
  %v1474 = vpack.c.bf16 %v1462, %v1461
  %v1475 = vpack.c.bf16 %v1464, %v1463
  %v1476 = vpack.c.bf16 %v1466, %v1465
  %v1477 = vpack.c.bf16 %v1468, %v1467
  %v1478 = vpack.c.bf16 %v1470, %v1469
  %v1479 = vpack.c.bf16 %v1472, %v1471
  %v1480 = vpack.c.bf16 %v1473, %v1473
  %v1481 = vpack.c.bf16 %v327, %v224
  %v1482 = vpack.c.bf16 %v533, %v430
  %v1483 = vpack.c.bf16 %v739, %v636
  %v1484 = vpack.c.bf16 %v945, %v842
  %v1485 = vpack.c.bf16 %v1151, %v1048
  %v1486 = vpack.c.bf16 %v1357, %v1254
  %v1487 = vpack.c.bf16 %v1460, %v1460
  %v1488 = vld [vmem:[%s3] sm:$0xf]
  %v1489 = vld [vmem:[%s3 + $0x4] sm:$0xf]
  %v1490 = vld [vmem:[%s4] sm:$0xf]
  %v1491 = vld [vmem:[%s4 + $0x4] sm:$0xf]
  %v1494 = vunpack.c.l.b16 %v1490
  %v1495 = vunpack.c.l.b16 %v1491
  %v1496 = vpack.c.b16 %v1495, %v1494
  %vm1498 = vcmask 130048
  %v1500 = vsel %vm1498, %v1481, 0
  %v1503 = vsel %vm1498, %v1482, 0
  %v1506 = vsel %vm1498, %v1483, 0
  %v1509 = vsel %vm1498, %v1484, 0
  %v1512 = vsel %vm1498, %v1485, 0
  %v1515 = vsel %vm1498, %v1486, 0
  %v1518 = vsel %vm1498, %v1487, 0
  %1520 = vmatprep.subr.bf16.mxu0 0
  %1521 = vmatpush1.bf16.msra.mxu0 %v1496
  %1522 = vmatprep.subr.bf16.mxu0 0
  %1523 = vmatpush1.bf16.msra.mxu0 0
  %1524 = vmatprep.subr.bf16.mxu0 0
  %1525 = vmatpush1.bf16.msra.mxu0 0
  %1526 = vmatprep.subr.bf16.mxu0 0
  %1527 = vmatpush1.bf16.msra.mxu0 0
  %1528 = vmatprep.subr.bf16.mxu0 0
  %1529 = vmatpush1.bf16.msra.mxu0 0
  %1530 = vmatprep.subr.bf16.mxu0 0
  %1531 = vmatpush1.bf16.msra.mxu0 0
  %1532 = vmatprep.subr.bf16.mxu0 0
  %1533 = vmatpush1.bf16.msra.mxu0 0
  %1534 = vmatprep.subr.bf16.mxu0 0
  %1535 = vmatpush1.bf16.msra.mxu0 0
  %1536 = vmatprep.subr.bf16.mxu0 0
  %1537 = vmatpush1.bf16.msra.mxu0 0
  %1538 = vmatprep.subr.bf16.mxu0 0
  %1539 = vmatpush1.bf16.msra.mxu0 0
  %1540 = vmatprep.subr.bf16.mxu0 0
  %1541 = vmatpush1.bf16.msra.mxu0 0
  %1542 = vmatprep.subr.bf16.mxu0 0
  %1543 = vmatpush1.bf16.msra.mxu0 0
  %1544 = vmatprep.subr.bf16.mxu0 0
  %1545 = vmatpush1.bf16.msra.mxu0 0
  %1546 = vmatprep.subr.bf16.mxu0 0
  %1547 = vmatpush1.bf16.msra.mxu0 0
  %1548 = vmatprep.subr.bf16.mxu0 0
  %1549 = vmatpush1.bf16.msra.mxu0 0
  %1550 = vmatprep.subr.bf16.mxu0 0
  %1551 = vmatpush1.bf16.msra.mxu0 0
  %1552 = vmatprep.mubr.bf16.mxu0 0
  %1553 = vmatmul.mubr.bf16.gmra.mrb[0].mxu0 %v1500
  %v1554 = vpop.f32.mrb[0].mxu0
  %v1555 = vadd.f32 0.0, %v1554
  %v1556 = vpop.f32.mrb[0].mxu0
  %v1557 = vpop.f32.mrb[0].mxu0
  %v1558 = vadd.f32 0.0, %v1557
  %v1559 = vpop.f32.mrb[0].mxu0
  %1560 = vmatprep.mubr.bf16.mxu0 0
  %1561 = vmatmul.mubr.bf16.gmra.mrb[0].mxu0 %v1503
  %v1562 = vpop.f32.mrb[0].mxu0
  %v1563 = vadd.f32 0.0, %v1562
  %v1564 = vpop.f32.mrb[0].mxu0
  %v1565 = vpop.f32.mrb[0].mxu0
  %v1566 = vadd.f32 0.0, %v1565
  %v1567 = vpop.f32.mrb[0].mxu0
  %1568 = vmatprep.mubr.bf16.mxu0 0
  %1569 = vmatmul.mubr.bf16.gmra.mrb[0].mxu0 %v1506
  %v1570 = vpop.f32.mrb[0].mxu0
  %v1571 = vadd.f32 0.0, %v1570
  %v1572 = vpop.f32.mrb[0].mxu0
  %v1573 = vpop.f32.mrb[0].mxu0
  %v1574 = vadd.f32 0.0, %v1573
  %v1575 = vpop.f32.mrb[0].mxu0
  %1576 = vmatprep.mubr.bf16.mxu0 0
  %1577 = vmatmul.mubr.bf16.gmra.mrb[0].mxu0 %v1509
  %v1578 = vpop.f32.mrb[0].mxu0
  %v1579 = vadd.f32 0.0, %v1578
  %v1580 = vpop.f32.mrb[0].mxu0
  %v1581 = vpop.f32.mrb[0].mxu0
  %v1582 = vadd.f32 0.0, %v1581
  %v1583 = vpop.f32.mrb[0].mxu0
  %1584 = vmatprep.mubr.bf16.mxu0 0
  %1585 = vmatmul.mubr.bf16.gmra.mrb[0].mxu0 %v1512
  %v1586 = vpop.f32.mrb[0].mxu0
  %v1587 = vadd.f32 0.0, %v1586
  %v1588 = vpop.f32.mrb[0].mxu0
  %v1589 = vpop.f32.mrb[0].mxu0
  %v1590 = vadd.f32 0.0, %v1589
  %v1591 = vpop.f32.mrb[0].mxu0
  %1592 = vmatprep.mubr.bf16.mxu0 0
  %1593 = vmatmul.mubr.bf16.gmra.mrb[0].mxu0 %v1515
  %v1594 = vpop.f32.mrb[0].mxu0
  %v1595 = vadd.f32 0.0, %v1594
  %v1596 = vpop.f32.mrb[0].mxu0
  %v1597 = vpop.f32.mrb[0].mxu0
  %v1598 = vadd.f32 0.0, %v1597
  %v1599 = vpop.f32.mrb[0].mxu0
  %1600 = vmatprep.mubr.bf16.mxu0 0
  %1601 = vmatmul.mubr.bf16.gmra.mrb[0].mxu0 %v1518
  %v1602 = vpop.f32.mrb[0].mxu0
  %v1603 = vadd.f32 0.0, %v1602
  %v1604 = vpop.f32.mrb[0].mxu0
  %v1605 = vpop.f32.mrb[0].mxu0
  %v1606 = vpop.f32.mrb[0].mxu0
  %1607 = vdwg.mxu0
  %v1610 = vunpack.c.l.b16 %v1488
  %v1611 = vunpack.c.l.b16 %v1489
  %v1612 = vpack.c.b16 %v1611, %v1610
  %v1615 = vsel %vm1498, %v1474, 0
  %v1618 = vsel %vm1498, %v1475, 0
  %v1621 = vsel %vm1498, %v1476, 0
  %v1624 = vsel %vm1498, %v1477, 0
  %v1627 = vsel %vm1498, %v1478, 0
  %v1630 = vsel %vm1498, %v1479, 0
  %v1633 = vsel %vm1498, %v1480, 0
  %1635 = vmatprep.subr.bf16.mxu0 0
  %1636 = vmatpush1.bf16.msra.mxu0 %v1612
  %1637 = vmatprep.subr.bf16.mxu0 0
  %1638 = vmatpush1.bf16.msra.mxu0 0
  %1639 = vmatprep.subr.bf16.mxu0 0
  %1640 = vmatpush1.bf16.msra.mxu0 0
  %1641 = vmatprep.subr.bf16.mxu0 0
  %1642 = vmatpush1.bf16.msra.mxu0 0
  %1643 = vmatprep.subr.bf16.mxu0 0
  %1644 = vmatpush1.bf16.msra.mxu0 0
  %1645 = vmatprep.subr.bf16.mxu0 0
  %1646 = vmatpush1.bf16.msra.mxu0 0
  %1647 = vmatprep.subr.bf16.mxu0 0
  %1648 = vmatpush1.bf16.msra.mxu0 0
  %1649 = vmatprep.subr.bf16.mxu0 0
  %1650 = vmatpush1.bf16.msra.mxu0 0
  %1651 = vmatprep.subr.bf16.mxu0 0
  %1652 = vmatpush1.bf16.msra.mxu0 0
  %1653 = vmatprep.subr.bf16.mxu0 0
  %1654 = vmatpush1.bf16.msra.mxu0 0
  %1655 = vmatprep.subr.bf16.mxu0 0
  %1656 = vmatpush1.bf16.msra.mxu0 0
  %1657 = vmatprep.subr.bf16.mxu0 0
  %1658 = vmatpush1.bf16.msra.mxu0 0
  %1659 = vmatprep.subr.bf16.mxu0 0
  %1660 = vmatpush1.bf16.msra.mxu0 0
  %1661 = vmatprep.subr.bf16.mxu0 0
  %1662 = vmatpush1.bf16.msra.mxu0 0
  %1663 = vmatprep.subr.bf16.mxu0 0
  %1664 = vmatpush1.bf16.msra.mxu0 0
  %1665 = vmatprep.subr.bf16.mxu0 0
  %1666 = vmatpush1.bf16.msra.mxu0 0
  %1667 = vmatprep.mubr.bf16.mxu0 0
  %1668 = vmatmul.mubr.bf16.gmra.mrb[0].mxu0 %v1615
  %v1669 = vpop.f32.mrb[0].mxu0
  %v1670 = vadd.f32 %v1555, %v1669
  %v1671 = vpop.f32.mrb[0].mxu0
  %v1672 = vpop.f32.mrb[0].mxu0
  %v1673 = vadd.f32 %v1558, %v1672
  %v1674 = vpop.f32.mrb[0].mxu0
  %1675 = vmatprep.mubr.bf16.mxu0 0
  %1676 = vmatmul.mubr.bf16.gmra.mrb[0].mxu0 %v1618
  %v1677 = vpop.f32.mrb[0].mxu0
  %v1678 = vadd.f32 %v1563, %v1677
  %v1679 = vpop.f32.mrb[0].mxu0
  %v1680 = vpop.f32.mrb[0].mxu0
  %v1681 = vadd.f32 %v1566, %v1680
  %v1682 = vpop.f32.mrb[0].mxu0
  %1683 = vmatprep.mubr.bf16.mxu0 0
  %1684 = vmatmul.mubr.bf16.gmra.mrb[0].mxu0 %v1621
  %v1685 = vpop.f32.mrb[0].mxu0
  %v1686 = vadd.f32 %v1571, %v1685
  %v1687 = vpop.f32.mrb[0].mxu0
  %v1688 = vpop.f32.mrb[0].mxu0
  %v1689 = vadd.f32 %v1574, %v1688
  %v1690 = vpop.f32.mrb[0].mxu0
  %1691 = vmatprep.mubr.bf16.mxu0 0
  %1692 = vmatmul.mubr.bf16.gmra.mrb[0].mxu0 %v1624
  %v1693 = vpop.f32.mrb[0].mxu0
  %v1694 = vadd.f32 %v1579, %v1693
  %v1695 = vpop.f32.mrb[0].mxu0
  %v1696 = vpop.f32.mrb[0].mxu0
  %v1697 = vadd.f32 %v1582, %v1696
  %v1698 = vpop.f32.mrb[0].mxu0
  %1699 = vmatprep.mubr.bf16.mxu0 0
  %1700 = vmatmul.mubr.bf16.gmra.mrb[0].mxu0 %v1627
  %v1701 = vpop.f32.mrb[0].mxu0
  %v1702 = vadd.f32 %v1587, %v1701
  %v1703 = vpop.f32.mrb[0].mxu0
  %v1704 = vpop.f32.mrb[0].mxu0
  %v1705 = vadd.f32 %v1590, %v1704
  %v1706 = vpop.f32.mrb[0].mxu0
  %1707 = vmatprep.mubr.bf16.mxu0 0
  %1708 = vmatmul.mubr.bf16.gmra.mrb[0].mxu0 %v1630
  %v1709 = vpop.f32.mrb[0].mxu0
  %v1710 = vadd.f32 %v1595, %v1709
  %v1711 = vpop.f32.mrb[0].mxu0
  %v1712 = vpop.f32.mrb[0].mxu0
  %v1713 = vadd.f32 %v1598, %v1712
  %v1714 = vpop.f32.mrb[0].mxu0
  %1715 = vmatprep.mubr.bf16.mxu0 0
  %1716 = vmatmul.mubr.bf16.gmra.mrb[0].mxu0 %v1633
  %v1717 = vpop.f32.mrb[0].mxu0
  %v1718 = vadd.f32 %v1603, %v1717
  %v1719 = vpop.f32.mrb[0].mxu0
  %v1720 = vpop.f32.mrb[0].mxu0
  %v1721 = vpop.f32.mrb[0].mxu0
  %1722 = vdwg.mxu0
  %v1723 = vld [vmem:[%s5] sm:$0x1]
  %v1725 = vlaneseq
  %v1726 = vshrl.u32 %v1725, 7
  %v1727 = vsub.s32 0, %v1726
  %v1728 = vrot.slane %v1723, %v1727
  %v1730 = vadd.f32 %v1670, %v1728
  %v1731 = vadd.f32 %v1673, %v1728
  %v1732 = vadd.f32 %v1678, %v1728
  %v1733 = vadd.f32 %v1681, %v1728
  %v1734 = vadd.f32 %v1686, %v1728
  %v1735 = vadd.f32 %v1689, %v1728
  %v1736 = vadd.f32 %v1694, %v1728
  %v1737 = vadd.f32 %v1697, %v1728
  %v1738 = vadd.f32 %v1702, %v1728
  %v1739 = vadd.f32 %v1705, %v1728
  %v1740 = vadd.f32 %v1710, %v1728
  %v1741 = vadd.f32 %v1713, %v1728
  %v1742 = vadd.f32 %v1718, %v1728
  %vm1743 = vcmask 261120
  %1744 = vst.msk [vmem:[%s6] sm:$0xff] %vm1743, %v1730
  %1745 = vst.msk [vmem:[%s6 + $0x8] sm:$0xff] %vm1743, %v1731
  %1746 = vst.msk [vmem:[%s6 + $0x10] sm:$0xff] %vm1743, %v1732
  %1747 = vst.msk [vmem:[%s6 + $0x18] sm:$0xff] %vm1743, %v1733
  %1748 = vst.msk [vmem:[%s6 + $0x20] sm:$0xff] %vm1743, %v1734
  %1749 = vst.msk [vmem:[%s6 + $0x28] sm:$0xff] %vm1743, %v1735
  %1750 = vst.msk [vmem:[%s6 + $0x30] sm:$0xff] %vm1743, %v1736
  %1751 = vst.msk [vmem:[%s6 + $0x38] sm:$0xff] %vm1743, %v1737
  %1752 = vst.msk [vmem:[%s6 + $0x40] sm:$0xff] %vm1743, %v1738
  %1753 = vst.msk [vmem:[%s6 + $0x48] sm:$0xff] %vm1743, %v1739
  %1754 = vst.msk [vmem:[%s6 + $0x50] sm:$0xff] %vm1743, %v1740
  %1755 = vst.msk [vmem:[%s6 + $0x58] sm:$0xff] %vm1743, %v1741
  %1756 = vst.msk [vmem:[%s6 + $0x60] sm:$0xff] %vm1743, %v1742
  // Predicated region
  $region26: #{tpu_custom_call.1} parent=0 // pred_check
    _
  $region27: #{tpu_custom_call.1} parent=0 // pred_check_branch
    %1758 = sbr.rel (0) target = $region29
  $region28: #{tpu_custom_call.1} parent=0 // pred_region
    _
  $region29: #{tpu_custom_call.1} parent=0 // pred_fallthru
    _
  // Predicated region
  $region30: #{tpu_custom_call.1} parent=0 // pred_check
    _
  $region31: #{tpu_custom_call.1} parent=0 // pred_check_branch
    %1760 = sbr.rel (0) target = $region33
  $region32: #{tpu_custom_call.1} parent=0 // pred_region
    _
  $region33: #{tpu_custom_call.1} parent=0 // pred_fallthru
    _

</llo_original>
